<compile_context>
chip_gen: v6e
topology: v6e:2x2x1
jax: 0.10.0
libtpu: 0.0.40
codegen_flags: <defaults>
</compile_context>

<pallas_src>
import jax
import jax.numpy as jnp
from jax.experimental import pallas as pl
from jax.experimental.pallas import tpu as pltpu


def lstm_bike_predictor(x, params):
    """x: (B, T, D) batch_first, like the PyTorch module. Returns (B, output_dim)."""
    B, T, D = x.shape
    H = params["whh0"].shape[0]
    HH = params["fw1"].shape[1]            # hidden_dim // 2
    O = params["fw2"].shape[1]
    W = max(4 * H, 128)                    # lane-dense slab / output width (128 here)

    B_pad = ((B + 7) // 8) * 8             # fill whole sublane groups
    TB = T * B_pad

    # ---- Input prep: time-major, batch-padded, flattened to (T*B_pad, D) so the
    # layer-0 input projection is a single in-kernel MXU pass.
    x_tm = jnp.transpose(x, (1, 0, 2))
    if B_pad != B:
        x_tm = jnp.pad(x_tm, ((0, 0), (0, B_pad - B), (0, 0)))
    x_flat = x_tm.reshape(TB, D).astype(jnp.float32)

    # ---- Parameter slab: everything packed into one (rows, W) array → 1 prologue DMA.
    def pad_cols(a):
        return jnp.pad(a.astype(jnp.float32), ((0, 0), (0, W - a.shape[1])))

    pieces = [
        pad_cols(params["wih0"]),                                        # (D,  W)
        pad_cols(params["whh0"]),                                        # (H,  W)
        pad_cols(params["wih1"]),                                        # (H,  W)
        pad_cols(params["whh1"]),                                        # (H,  W)
        pad_cols(jnp.broadcast_to(params["b0"], (TB, 4 * H))),           # (TB, W)  b0 pre-tiled over time
        pad_cols(jnp.broadcast_to(params["b1"], (B_pad, 4 * H))),        # (Bp, W)
        pad_cols(params["fw1"]),                                         # (H,  W)  cols >= HH are zero
        pad_cols(jnp.broadcast_to(params["fb1"], (B_pad, HH))),          # (Bp, W)
        pad_cols(params["fw2"]),                                         # (HH, W)  cols >= O are zero
        pad_cols(jnp.broadcast_to(params["fb2"], (B_pad, O))),           # (Bp, W)
    ]
    slab = jnp.concatenate(pieces, axis=0)

    # Static row offsets into the slab (all multiples of 8 → sublane aligned).
    o_wih0 = 0
    o_whh0 = o_wih0 + D
    o_wih1 = o_whh0 + H
    o_whh1 = o_wih1 + H
    o_b0   = o_whh1 + H
    o_b1   = o_b0 + TB
    o_fw1  = o_b1 + B_pad
    o_fb1  = o_fw1 + H
    o_fw2  = o_fb1 + B_pad
    o_fb2  = o_fw2 + HH
    n_rows = o_fb2 + B_pad
    assert slab.shape == (n_rows, W)

    Bp = B_pad

    def kernel(x_ref, p_ref, out_ref):
        # One-time loads of all parameters (static, sublane-aligned row slices).
        wih0 = p_ref[o_wih0:o_whh0, 0:4 * H]        # (D, 4H)
        whh0 = p_ref[o_whh0:o_wih1, 0:4 * H]        # (H, 4H)
        wih1 = p_ref[o_wih1:o_whh1, 0:4 * H]        # (H, 4H)
        whh1 = p_ref[o_whh1:o_b0, 0:4 * H]          # (H, 4H)
        b0t  = p_ref[o_b0:o_b1, 0:4 * H]            # (T*Bp, 4H)  pre-tiled bias
        b1   = p_ref[o_b1:o_fw1, 0:4 * H]           # (Bp, 4H)
        fw1  = p_ref[o_fw1:o_fb1, :]                # (H, W)   zero cols >= HH
        fb1  = p_ref[o_fb1:o_fw2, :]                # (Bp, W)
        fw2  = p_ref[o_fw2:o_fb2, :]                # (HH, W)  zero cols >= O
        fb2  = p_ref[o_fb2:n_rows, :]               # (Bp, W)

        # Hoisted off the recurrence: one MXU pass projects the whole input sequence
        # through layer 0's input weights, bias already folded in.
        xproj = jnp.dot(x_ref[...], wih0,
                        preferred_element_type=jnp.float32) + b0t        # (T*Bp, 4H)

        def gates_to_hc(gates, c_prev):
            # Full-lane activations (one sigmoid + one tanh over all 4H lanes),
            # then slice out the i/f/g/o pieces (PyTorch gate order).
            sig = jax.nn.sigmoid(gates)
            th = jnp.tanh(gates)
            i = sig[:, 0 * H:1 * H]
            f = sig[:, 1 * H:2 * H]
            g = th[:, 2 * H:3 * H]
            o = sig[:, 3 * H:4 * H]
            c_new = f * c_prev + i * g
            return o * jnp.tanh(c_new), c_new

        h0 = jnp.zeros((Bp, H), jnp.float32)
        c0 = jnp.zeros((Bp, H), jnp.float32)
        h1 = jnp.zeros((Bp, H), jnp.float32)
        c1 = jnp.zeros((Bp, H), jnp.float32)

        # Fully-unrolled time recurrence (T is small & static); states stay in vregs.
        for t in range(T):
            # Layer 0: only the recurrent matmul is on the critical path.
            gates0 = xproj[t * Bp:(t + 1) * Bp, :] + jnp.dot(
                h0, whh0, preferred_element_type=jnp.float32)
            h0, c0 = gates_to_hc(gates0, c0)

            # Layer 1: two small dots, operands stay in vregs (no VMEM scratch).
            gates1 = (jnp.dot(h0, wih1, preferred_element_type=jnp.float32)
                      + jnp.dot(h1, whh1, preferred_element_type=jnp.float32)
                      + b1)
            h1, c1 = gates_to_hc(gates1, c1)

        # FC head (Linear -> ReLU -> Linear) on the final layer-1 hidden state.
        z = jnp.maximum(jnp.dot(h1, fw1, preferred_element_type=jnp.float32) + fb1, 0.0)
        y = jnp.dot(z[:, 0:HH], fw2, preferred_element_type=jnp.float32) + fb2
        out_ref[...] = y.astype(out_ref.dtype)     # lane-dense (Bp, W) store

    vmem = lambda: pl.BlockSpec(memory_space=pltpu.MemorySpace.VMEM)

    out = pl.pallas_call(
        kernel,
        out_shape=jax.ShapeDtypeStruct((B_pad, W), jnp.float32),
        in_specs=[vmem(), vmem()],
        out_specs=vmem(),
    )(x_flat, slab)

    return out[:B, :O]


def lstm_bike_predictor_ref(x, params):
    """Pure-JAX reference (mirrors PyTorch nn.LSTM + fc head, eval mode)."""
    B, T, D = x.shape
    H = params["whh0"].shape[0]

    def cell(inp, h_prev, c_prev, wih, whh, b):
        gates = inp @ wih + h_prev @ whh + b
        i = jax.nn.sigmoid(gates[:, 0 * H:1 * H])
        f = jax.nn.sigmoid(gates[:, 1 * H:2 * H])
        g = jnp.tanh(gates[:, 2 * H:3 * H])
        o = jax.nn.sigmoid(gates[:, 3 * H:4 * H])
        c_new = f * c_prev + i * g
        return o * jnp.tanh(c_new), c_new

    def step(carry, x_t):
        h0, c0, h1, c1 = carry
        h0, c0 = cell(x_t, h0, c0, params["wih0"], params["whh0"], params["b0"])
        h1, c1 = cell(h0, h1, c1, params["wih1"], params["whh1"], params["b1"])
        return (h0, c0, h1, c1), None

    zeros = jnp.zeros((B, H), jnp.float32)
    (h0, c0, h1, c1), _ = jax.lax.scan(step, (zeros, zeros, zeros, zeros),
                                       jnp.transpose(x, (1, 0, 2)))
    z = jnp.maximum(h1 @ params["fw1"] + params["fb1"], 0.0)
    return z @ params["fw2"] + params["fb2"]


def init_params(key, input_dim, hidden_dim, output_dim):
    """Deterministic init matching the PyTorch module's parameter shapes.

    PyTorch stores W_ih as (4H, in) and W_hh as (4H, H); we keep them transposed so
    the kernel does row-major (B, in) @ (in, 4H) matmuls. The two LSTM bias vectors
    (b_ih + b_hh) are pre-summed.
    """
    H = hidden_dim
    k = 1.0 / jnp.sqrt(H)
    keys = jax.random.split(key, 12)
    u = lambda kk, shape: jax.random.uniform(kk, shape, jnp.float32, -k, k)
    params = {
        "wih0": u(keys[0], (input_dim, 4 * H)),
        "whh0": u(keys[1], (H, 4 * H)),
        "b0":   u(keys[2], (1, 4 * H)) + u(keys[3], (1, 4 * H)),
        "wih1": u(keys[4], (H, 4 * H)),
        "whh1": u(keys[5], (H, 4 * H)),
        "b1":   u(keys[6], (1, 4 * H)) + u(keys[7], (1, 4 * H)),
        "fw1":  u(keys[8], (H, H // 2)),
        "fb1":  u(keys[9], (1, H // 2)),
        "fw2":  u(keys[10], (H // 2, output_dim)),
        "fb2":  u(keys[11], (1, output_dim)),
    }
    return params


if __name__ == "__main__":
    input_dim, hidden_dim, output_dim = 8, 32, 6
    batch, seq = 4, 8

    key = jax.random.PRNGKey(0)
    k_x, k_p = jax.random.split(key)
    x = jax.random.normal(k_x, (batch, seq, input_dim), jnp.float32)
    params = init_params(k_p, input_dim, hidden_dim, output_dim)

    out = jax.block_until_ready(jax.jit(lstm_bike_predictor)(x, params))

    ref = jax.block_until_ready(lstm_bike_predictor_ref(x, params))
    assert out.shape == (batch, output_dim), out.shape
    assert jnp.allclose(out, ref, atol=1e-4, rtol=1e-4), (out, ref)

    print("KERNEL_OK")
</pallas_src>

<mosaic_0001>
module attributes {stable_mosaic.version = 11 : i64} {
  func.func @kernel(%arg0: memref<64x8xf32, #tpu.memory_space<vmem>>, %arg1: memref<240x128xf32, #tpu.memory_space<vmem>>, %arg2: memref<8x128xf32, #tpu.memory_space<vmem>>) attributes {dimension_semantics = [], scalar_prefetch = 0 : i64, scratch_operands = 0 : i64, tpu.core_type = #tpu.core_type<tc>} {
    %c0 = arith.constant 0 : index
    %c0_0 = arith.constant 0 : index
    %0 = vector.load %arg1[%c0, %c0_0] : memref<240x128xf32, #tpu.memory_space<vmem>>, vector<8x128xf32>
    %c8 = arith.constant 8 : index
    %c0_1 = arith.constant 0 : index
    %1 = vector.load %arg1[%c8, %c0_1] : memref<240x128xf32, #tpu.memory_space<vmem>>, vector<32x128xf32>
    %c40 = arith.constant 40 : index
    %c0_2 = arith.constant 0 : index
    %2 = vector.load %arg1[%c40, %c0_2] : memref<240x128xf32, #tpu.memory_space<vmem>>, vector<32x128xf32>
    %c72 = arith.constant 72 : index
    %c0_3 = arith.constant 0 : index
    %3 = vector.load %arg1[%c72, %c0_3] : memref<240x128xf32, #tpu.memory_space<vmem>>, vector<32x128xf32>
    %c104 = arith.constant 104 : index
    %c0_4 = arith.constant 0 : index
    %4 = vector.load %arg1[%c104, %c0_4] : memref<240x128xf32, #tpu.memory_space<vmem>>, vector<64x128xf32>
    %c168 = arith.constant 168 : index
    %c0_5 = arith.constant 0 : index
    %5 = vector.load %arg1[%c168, %c0_5] : memref<240x128xf32, #tpu.memory_space<vmem>>, vector<8x128xf32>
    %c176 = arith.constant 176 : index
    %c0_6 = arith.constant 0 : index
    %6 = vector.load %arg1[%c176, %c0_6] : memref<240x128xf32, #tpu.memory_space<vmem>>, vector<32x128xf32>
    %c208 = arith.constant 208 : index
    %c0_7 = arith.constant 0 : index
    %7 = vector.load %arg1[%c208, %c0_7] : memref<240x128xf32, #tpu.memory_space<vmem>>, vector<8x128xf32>
    %c216 = arith.constant 216 : index
    %c0_8 = arith.constant 0 : index
    %8 = vector.load %arg1[%c216, %c0_8] : memref<240x128xf32, #tpu.memory_space<vmem>>, vector<16x128xf32>
    %c232 = arith.constant 232 : index
    %c0_9 = arith.constant 0 : index
    %9 = vector.load %arg1[%c232, %c0_9] : memref<240x128xf32, #tpu.memory_space<vmem>>, vector<8x128xf32>
    %c0_10 = arith.constant 0 : index
    %c0_11 = arith.constant 0 : index
    %10 = vector.load %arg0[%c0_10, %c0_11] : memref<64x8xf32, #tpu.memory_space<vmem>>, vector<64x8xf32>
    %cst = arith.constant dense<0.000000e+00> : vector<64x128xf32>
    %11 = tpu.matmul %10, %0, %cst {dimension_numbers = #tpu.dot_dimension_numbers<[1], [0], [0], [1], [0, 0, 1, 1], [], []>} : vector<64x8xf32>, vector<8x128xf32>, vector<64x128xf32> -> vector<64x128xf32>
    %12 = arith.addf %11, %4 : vector<64x128xf32>
    %cst_12 = arith.constant 0.000000e+00 : f32
    %13 = vector.broadcast %cst_12 : f32 to vector<8x32xf32>
    %cst_13 = arith.constant 0.000000e+00 : f32
    %14 = vector.broadcast %cst_13 : f32 to vector<8x32xf32>
    %cst_14 = arith.constant 0.000000e+00 : f32
    %15 = vector.broadcast %cst_14 : f32 to vector<8x32xf32>
    %cst_15 = arith.constant 0.000000e+00 : f32
    %16 = vector.broadcast %cst_15 : f32 to vector<8x32xf32>
    %17 = vector.extract_strided_slice %12 {offsets = [0, 0], sizes = [8, 128], strides = [1, 1]} : vector<64x128xf32> to vector<8x128xf32>
    %cst_16 = arith.constant dense<0.000000e+00> : vector<8x128xf32>
    %18 = tpu.matmul %13, %1, %cst_16 {dimension_numbers = #tpu.dot_dimension_numbers<[1], [0], [0], [1], [0, 0, 1, 1], [], []>} : vector<8x32xf32>, vector<32x128xf32>, vector<8x128xf32> -> vector<8x128xf32>
    %19 = arith.addf %17, %18 : vector<8x128xf32>
    %20 = arith.negf %19 : vector<8x128xf32>
    %21 = math.exp %20 : vector<8x128xf32>
    %cst_17 = arith.constant 1.000000e+00 : f32
    %22 = vector.broadcast %cst_17 : f32 to vector<8x128xf32>
    %23 = arith.addf %22, %21 : vector<8x128xf32>
    %24 = arith.divf %22, %23 : vector<8x128xf32>
    %25 = math.tanh %19 : vector<8x128xf32>
    %26 = vector.extract_strided_slice %24 {offsets = [0, 0], sizes = [8, 32], strides = [1, 1]} : vector<8x128xf32> to vector<8x32xf32>
    %27 = vector.extract_strided_slice %24 {offsets = [0, 32], sizes = [8, 32], strides = [1, 1]} : vector<8x128xf32> to vector<8x32xf32>
    %28 = vector.extract_strided_slice %25 {offsets = [0, 64], sizes = [8, 32], strides = [1, 1]} : vector<8x128xf32> to vector<8x32xf32>
    %29 = vector.extract_strided_slice %24 {offsets = [0, 96], sizes = [8, 32], strides = [1, 1]} : vector<8x128xf32> to vector<8x32xf32>
    %30 = arith.mulf %27, %14 : vector<8x32xf32>
    %31 = arith.mulf %26, %28 : vector<8x32xf32>
    %32 = arith.addf %30, %31 : vector<8x32xf32>
    %33 = math.tanh %32 : vector<8x32xf32>
    %34 = arith.mulf %29, %33 : vector<8x32xf32>
    %cst_18 = arith.constant dense<0.000000e+00> : vector<8x128xf32>
    %35 = tpu.matmul %34, %2, %cst_18 {dimension_numbers = #tpu.dot_dimension_numbers<[1], [0], [0], [1], [0, 0, 1, 1], [], []>} : vector<8x32xf32>, vector<32x128xf32>, vector<8x128xf32> -> vector<8x128xf32>
    %cst_19 = arith.constant dense<0.000000e+00> : vector<8x128xf32>
    %36 = tpu.matmul %15, %3, %cst_19 {dimension_numbers = #tpu.dot_dimension_numbers<[1], [0], [0], [1], [0, 0, 1, 1], [], []>} : vector<8x32xf32>, vector<32x128xf32>, vector<8x128xf32> -> vector<8x128xf32>
    %37 = arith.addf %35, %36 : vector<8x128xf32>
    %38 = arith.addf %37, %5 : vector<8x128xf32>
    %39 = arith.negf %38 : vector<8x128xf32>
    %40 = math.exp %39 : vector<8x128xf32>
    %cst_20 = arith.constant 1.000000e+00 : f32
    %41 = vector.broadcast %cst_20 : f32 to vector<8x128xf32>
    %42 = arith.addf %41, %40 : vector<8x128xf32>
    %43 = arith.divf %41, %42 : vector<8x128xf32>
    %44 = math.tanh %38 : vector<8x128xf32>
    %45 = vector.extract_strided_slice %43 {offsets = [0, 0], sizes = [8, 32], strides = [1, 1]} : vector<8x128xf32> to vector<8x32xf32>
    %46 = vector.extract_strided_slice %43 {offsets = [0, 32], sizes = [8, 32], strides = [1, 1]} : vector<8x128xf32> to vector<8x32xf32>
    %47 = vector.extract_strided_slice %44 {offsets = [0, 64], sizes = [8, 32], strides = [1, 1]} : vector<8x128xf32> to vector<8x32xf32>
    %48 = vector.extract_strided_slice %43 {offsets = [0, 96], sizes = [8, 32], strides = [1, 1]} : vector<8x128xf32> to vector<8x32xf32>
    %49 = arith.mulf %46, %16 : vector<8x32xf32>
    %50 = arith.mulf %45, %47 : vector<8x32xf32>
    %51 = arith.addf %49, %50 : vector<8x32xf32>
    %52 = math.tanh %51 : vector<8x32xf32>
    %53 = arith.mulf %48, %52 : vector<8x32xf32>
    %54 = vector.extract_strided_slice %12 {offsets = [8, 0], sizes = [8, 128], strides = [1, 1]} : vector<64x128xf32> to vector<8x128xf32>
    %cst_21 = arith.constant dense<0.000000e+00> : vector<8x128xf32>
    %55 = tpu.matmul %34, %1, %cst_21 {dimension_numbers = #tpu.dot_dimension_numbers<[1], [0], [0], [1], [0, 0, 1, 1], [], []>} : vector<8x32xf32>, vector<32x128xf32>, vector<8x128xf32> -> vector<8x128xf32>
    %56 = arith.addf %54, %55 : vector<8x128xf32>
    %57 = arith.negf %56 : vector<8x128xf32>
    %58 = math.exp %57 : vector<8x128xf32>
    %cst_22 = arith.constant 1.000000e+00 : f32
    %59 = vector.broadcast %cst_22 : f32 to vector<8x128xf32>
    %60 = arith.addf %59, %58 : vector<8x128xf32>
    %61 = arith.divf %59, %60 : vector<8x128xf32>
    %62 = math.tanh %56 : vector<8x128xf32>
    %63 = vector.extract_strided_slice %61 {offsets = [0, 0], sizes = [8, 32], strides = [1, 1]} : vector<8x128xf32> to vector<8x32xf32>
    %64 = vector.extract_strided_slice %61 {offsets = [0, 32], sizes = [8, 32], strides = [1, 1]} : vector<8x128xf32> to vector<8x32xf32>
    %65 = vector.extract_strided_slice %62 {offsets = [0, 64], sizes = [8, 32], strides = [1, 1]} : vector<8x128xf32> to vector<8x32xf32>
    %66 = vector.extract_strided_slice %61 {offsets = [0, 96], sizes = [8, 32], strides = [1, 1]} : vector<8x128xf32> to vector<8x32xf32>
    %67 = arith.mulf %64, %32 : vector<8x32xf32>
    %68 = arith.mulf %63, %65 : vector<8x32xf32>
    %69 = arith.addf %67, %68 : vector<8x32xf32>
    %70 = math.tanh %69 : vector<8x32xf32>
    %71 = arith.mulf %66, %70 : vector<8x32xf32>
    %cst_23 = arith.constant dense<0.000000e+00> : vector<8x128xf32>
    %72 = tpu.matmul %71, %2, %cst_23 {dimension_numbers = #tpu.dot_dimension_numbers<[1], [0], [0], [1], [0, 0, 1, 1], [], []>} : vector<8x32xf32>, vector<32x128xf32>, vector<8x128xf32> -> vector<8x128xf32>
    %cst_24 = arith.constant dense<0.000000e+00> : vector<8x128xf32>
    %73 = tpu.matmul %53, %3, %cst_24 {dimension_numbers = #tpu.dot_dimension_numbers<[1], [0], [0], [1], [0, 0, 1, 1], [], []>} : vector<8x32xf32>, vector<32x128xf32>, vector<8x128xf32> -> vector<8x128xf32>
    %74 = arith.addf %72, %73 : vector<8x128xf32>
    %75 = arith.addf %74, %5 : vector<8x128xf32>
    %76 = arith.negf %75 : vector<8x128xf32>
    %77 = math.exp %76 : vector<8x128xf32>
    %cst_25 = arith.constant 1.000000e+00 : f32
    %78 = vector.broadcast %cst_25 : f32 to vector<8x128xf32>
    %79 = arith.addf %78, %77 : vector<8x128xf32>
    %80 = arith.divf %78, %79 : vector<8x128xf32>
    %81 = math.tanh %75 : vector<8x128xf32>
    %82 = vector.extract_strided_slice %80 {offsets = [0, 0], sizes = [8, 32], strides = [1, 1]} : vector<8x128xf32> to vector<8x32xf32>
    %83 = vector.extract_strided_slice %80 {offsets = [0, 32], sizes = [8, 32], strides = [1, 1]} : vector<8x128xf32> to vector<8x32xf32>
    %84 = vector.extract_strided_slice %81 {offsets = [0, 64], sizes = [8, 32], strides = [1, 1]} : vector<8x128xf32> to vector<8x32xf32>
    %85 = vector.extract_strided_slice %80 {offsets = [0, 96], sizes = [8, 32], strides = [1, 1]} : vector<8x128xf32> to vector<8x32xf32>
    %86 = arith.mulf %83, %51 : vector<8x32xf32>
    %87 = arith.mulf %82, %84 : vector<8x32xf32>
    %88 = arith.addf %86, %87 : vector<8x32xf32>
    %89 = math.tanh %88 : vector<8x32xf32>
    %90 = arith.mulf %85, %89 : vector<8x32xf32>
    %91 = vector.extract_strided_slice %12 {offsets = [16, 0], sizes = [8, 128], strides = [1, 1]} : vector<64x128xf32> to vector<8x128xf32>
    %cst_26 = arith.constant dense<0.000000e+00> : vector<8x128xf32>
    %92 = tpu.matmul %71, %1, %cst_26 {dimension_numbers = #tpu.dot_dimension_numbers<[1], [0], [0], [1], [0, 0, 1, 1], [], []>} : vector<8x32xf32>, vector<32x128xf32>, vector<8x128xf32> -> vector<8x128xf32>
    %93 = arith.addf %91, %92 : vector<8x128xf32>
    %94 = arith.negf %93 : vector<8x128xf32>
    %95 = math.exp %94 : vector<8x128xf32>
    %cst_27 = arith.constant 1.000000e+00 : f32
    %96 = vector.broadcast %cst_27 : f32 to vector<8x128xf32>
    %97 = arith.addf %96, %95 : vector<8x128xf32>
    %98 = arith.divf %96, %97 : vector<8x128xf32>
    %99 = math.tanh %93 : vector<8x128xf32>
    %100 = vector.extract_strided_slice %98 {offsets = [0, 0], sizes = [8, 32], strides = [1, 1]} : vector<8x128xf32> to vector<8x32xf32>
    %101 = vector.extract_strided_slice %98 {offsets = [0, 32], sizes = [8, 32], strides = [1, 1]} : vector<8x128xf32> to vector<8x32xf32>
    %102 = vector.extract_strided_slice %99 {offsets = [0, 64], sizes = [8, 32], strides = [1, 1]} : vector<8x128xf32> to vector<8x32xf32>
    %103 = vector.extract_strided_slice %98 {offsets = [0, 96], sizes = [8, 32], strides = [1, 1]} : vector<8x128xf32> to vector<8x32xf32>
    %104 = arith.mulf %101, %69 : vector<8x32xf32>
    %105 = arith.mulf %100, %102 : vector<8x32xf32>
    %106 = arith.addf %104, %105 : vector<8x32xf32>
    %107 = math.tanh %106 : vector<8x32xf32>
    %108 = arith.mulf %103, %107 : vector<8x32xf32>
    %cst_28 = arith.constant dense<0.000000e+00> : vector<8x128xf32>
    %109 = tpu.matmul %108, %2, %cst_28 {dimension_numbers = #tpu.dot_dimension_numbers<[1], [0], [0], [1], [0, 0, 1, 1], [], []>} : vector<8x32xf32>, vector<32x128xf32>, vector<8x128xf32> -> vector<8x128xf32>
    %cst_29 = arith.constant dense<0.000000e+00> : vector<8x128xf32>
    %110 = tpu.matmul %90, %3, %cst_29 {dimension_numbers = #tpu.dot_dimension_numbers<[1], [0], [0], [1], [0, 0, 1, 1], [], []>} : vector<8x32xf32>, vector<32x128xf32>, vector<8x128xf32> -> vector<8x128xf32>
    %111 = arith.addf %109, %110 : vector<8x128xf32>
    %112 = arith.addf %111, %5 : vector<8x128xf32>
    %113 = arith.negf %112 : vector<8x128xf32>
    %114 = math.exp %113 : vector<8x128xf32>
    %cst_30 = arith.constant 1.000000e+00 : f32
    %115 = vector.broadcast %cst_30 : f32 to vector<8x128xf32>
    %116 = arith.addf %115, %114 : vector<8x128xf32>
    %117 = arith.divf %115, %116 : vector<8x128xf32>
    %118 = math.tanh %112 : vector<8x128xf32>
    %119 = vector.extract_strided_slice %117 {offsets = [0, 0], sizes = [8, 32], strides = [1, 1]} : vector<8x128xf32> to vector<8x32xf32>
    %120 = vector.extract_strided_slice %117 {offsets = [0, 32], sizes = [8, 32], strides = [1, 1]} : vector<8x128xf32> to vector<8x32xf32>
    %121 = vector.extract_strided_slice %118 {offsets = [0, 64], sizes = [8, 32], strides = [1, 1]} : vector<8x128xf32> to vector<8x32xf32>
    %122 = vector.extract_strided_slice %117 {offsets = [0, 96], sizes = [8, 32], strides = [1, 1]} : vector<8x128xf32> to vector<8x32xf32>
    %123 = arith.mulf %120, %88 : vector<8x32xf32>
    %124 = arith.mulf %119, %121 : vector<8x32xf32>
    %125 = arith.addf %123, %124 : vector<8x32xf32>
    %126 = math.tanh %125 : vector<8x32xf32>
    %127 = arith.mulf %122, %126 : vector<8x32xf32>
    %128 = vector.extract_strided_slice %12 {offsets = [24, 0], sizes = [8, 128], strides = [1, 1]} : vector<64x128xf32> to vector<8x128xf32>
    %cst_31 = arith.constant dense<0.000000e+00> : vector<8x128xf32>
    %129 = tpu.matmul %108, %1, %cst_31 {dimension_numbers = #tpu.dot_dimension_numbers<[1], [0], [0], [1], [0, 0, 1, 1], [], []>} : vector<8x32xf32>, vector<32x128xf32>, vector<8x128xf32> -> vector<8x128xf32>
    %130 = arith.addf %128, %129 : vector<8x128xf32>
    %131 = arith.negf %130 : vector<8x128xf32>
    %132 = math.exp %131 : vector<8x128xf32>
    %cst_32 = arith.constant 1.000000e+00 : f32
    %133 = vector.broadcast %cst_32 : f32 to vector<8x128xf32>
    %134 = arith.addf %133, %132 : vector<8x128xf32>
    %135 = arith.divf %133, %134 : vector<8x128xf32>
    %136 = math.tanh %130 : vector<8x128xf32>
    %137 = vector.extract_strided_slice %135 {offsets = [0, 0], sizes = [8, 32], strides = [1, 1]} : vector<8x128xf32> to vector<8x32xf32>
    %138 = vector.extract_strided_slice %135 {offsets = [0, 32], sizes = [8, 32], strides = [1, 1]} : vector<8x128xf32> to vector<8x32xf32>
    %139 = vector.extract_strided_slice %136 {offsets = [0, 64], sizes = [8, 32], strides = [1, 1]} : vector<8x128xf32> to vector<8x32xf32>
    %140 = vector.extract_strided_slice %135 {offsets = [0, 96], sizes = [8, 32], strides = [1, 1]} : vector<8x128xf32> to vector<8x32xf32>
    %141 = arith.mulf %138, %106 : vector<8x32xf32>
    %142 = arith.mulf %137, %139 : vector<8x32xf32>
    %143 = arith.addf %141, %142 : vector<8x32xf32>
    %144 = math.tanh %143 : vector<8x32xf32>
    %145 = arith.mulf %140, %144 : vector<8x32xf32>
    %cst_33 = arith.constant dense<0.000000e+00> : vector<8x128xf32>
    %146 = tpu.matmul %145, %2, %cst_33 {dimension_numbers = #tpu.dot_dimension_numbers<[1], [0], [0], [1], [0, 0, 1, 1], [], []>} : vector<8x32xf32>, vector<32x128xf32>, vector<8x128xf32> -> vector<8x128xf32>
    %cst_34 = arith.constant dense<0.000000e+00> : vector<8x128xf32>
    %147 = tpu.matmul %127, %3, %cst_34 {dimension_numbers = #tpu.dot_dimension_numbers<[1], [0], [0], [1], [0, 0, 1, 1], [], []>} : vector<8x32xf32>, vector<32x128xf32>, vector<8x128xf32> -> vector<8x128xf32>
    %148 = arith.addf %146, %147 : vector<8x128xf32>
    %149 = arith.addf %148, %5 : vector<8x128xf32>
    %150 = arith.negf %149 : vector<8x128xf32>
    %151 = math.exp %150 : vector<8x128xf32>
    %cst_35 = arith.constant 1.000000e+00 : f32
    %152 = vector.broadcast %cst_35 : f32 to vector<8x128xf32>
    %153 = arith.addf %152, %151 : vector<8x128xf32>
    %154 = arith.divf %152, %153 : vector<8x128xf32>
    %155 = math.tanh %149 : vector<8x128xf32>
    %156 = vector.extract_strided_slice %154 {offsets = [0, 0], sizes = [8, 32], strides = [1, 1]} : vector<8x128xf32> to vector<8x32xf32>
    %157 = vector.extract_strided_slice %154 {offsets = [0, 32], sizes = [8, 32], strides = [1, 1]} : vector<8x128xf32> to vector<8x32xf32>
    %158 = vector.extract_strided_slice %155 {offsets = [0, 64], sizes = [8, 32], strides = [1, 1]} : vector<8x128xf32> to vector<8x32xf32>
    %159 = vector.extract_strided_slice %154 {offsets = [0, 96], sizes = [8, 32], strides = [1, 1]} : vector<8x128xf32> to vector<8x32xf32>
    %160 = arith.mulf %157, %125 : vector<8x32xf32>
    %161 = arith.mulf %156, %158 : vector<8x32xf32>
    %162 = arith.addf %160, %161 : vector<8x32xf32>
    %163 = math.tanh %162 : vector<8x32xf32>
    %164 = arith.mulf %159, %163 : vector<8x32xf32>
    %165 = vector.extract_strided_slice %12 {offsets = [32, 0], sizes = [8, 128], strides = [1, 1]} : vector<64x128xf32> to vector<8x128xf32>
    %cst_36 = arith.constant dense<0.000000e+00> : vector<8x128xf32>
    %166 = tpu.matmul %145, %1, %cst_36 {dimension_numbers = #tpu.dot_dimension_numbers<[1], [0], [0], [1], [0, 0, 1, 1], [], []>} : vector<8x32xf32>, vector<32x128xf32>, vector<8x128xf32> -> vector<8x128xf32>
    %167 = arith.addf %165, %166 : vector<8x128xf32>
    %168 = arith.negf %167 : vector<8x128xf32>
    %169 = math.exp %168 : vector<8x128xf32>
    %cst_37 = arith.constant 1.000000e+00 : f32
    %170 = vector.broadcast %cst_37 : f32 to vector<8x128xf32>
    %171 = arith.addf %170, %169 : vector<8x128xf32>
    %172 = arith.divf %170, %171 : vector<8x128xf32>
    %173 = math.tanh %167 : vector<8x128xf32>
    %174 = vector.extract_strided_slice %172 {offsets = [0, 0], sizes = [8, 32], strides = [1, 1]} : vector<8x128xf32> to vector<8x32xf32>
    %175 = vector.extract_strided_slice %172 {offsets = [0, 32], sizes = [8, 32], strides = [1, 1]} : vector<8x128xf32> to vector<8x32xf32>
    %176 = vector.extract_strided_slice %173 {offsets = [0, 64], sizes = [8, 32], strides = [1, 1]} : vector<8x128xf32> to vector<8x32xf32>
    %177 = vector.extract_strided_slice %172 {offsets = [0, 96], sizes = [8, 32], strides = [1, 1]} : vector<8x128xf32> to vector<8x32xf32>
    %178 = arith.mulf %175, %143 : vector<8x32xf32>
    %179 = arith.mulf %174, %176 : vector<8x32xf32>
    %180 = arith.addf %178, %179 : vector<8x32xf32>
    %181 = math.tanh %180 : vector<8x32xf32>
    %182 = arith.mulf %177, %181 : vector<8x32xf32>
    %cst_38 = arith.constant dense<0.000000e+00> : vector<8x128xf32>
    %183 = tpu.matmul %182, %2, %cst_38 {dimension_numbers = #tpu.dot_dimension_numbers<[1], [0], [0], [1], [0, 0, 1, 1], [], []>} : vector<8x32xf32>, vector<32x128xf32>, vector<8x128xf32> -> vector<8x128xf32>
    %cst_39 = arith.constant dense<0.000000e+00> : vector<8x128xf32>
    %184 = tpu.matmul %164, %3, %cst_39 {dimension_numbers = #tpu.dot_dimension_numbers<[1], [0], [0], [1], [0, 0, 1, 1], [], []>} : vector<8x32xf32>, vector<32x128xf32>, vector<8x128xf32> -> vector<8x128xf32>
    %185 = arith.addf %183, %184 : vector<8x128xf32>
    %186 = arith.addf %185, %5 : vector<8x128xf32>
    %187 = arith.negf %186 : vector<8x128xf32>
    %188 = math.exp %187 : vector<8x128xf32>
    %cst_40 = arith.constant 1.000000e+00 : f32
    %189 = vector.broadcast %cst_40 : f32 to vector<8x128xf32>
    %190 = arith.addf %189, %188 : vector<8x128xf32>
    %191 = arith.divf %189, %190 : vector<8x128xf32>
    %192 = math.tanh %186 : vector<8x128xf32>
    %193 = vector.extract_strided_slice %191 {offsets = [0, 0], sizes = [8, 32], strides = [1, 1]} : vector<8x128xf32> to vector<8x32xf32>
    %194 = vector.extract_strided_slice %191 {offsets = [0, 32], sizes = [8, 32], strides = [1, 1]} : vector<8x128xf32> to vector<8x32xf32>
    %195 = vector.extract_strided_slice %192 {offsets = [0, 64], sizes = [8, 32], strides = [1, 1]} : vector<8x128xf32> to vector<8x32xf32>
    %196 = vector.extract_strided_slice %191 {offsets = [0, 96], sizes = [8, 32], strides = [1, 1]} : vector<8x128xf32> to vector<8x32xf32>
    %197 = arith.mulf %194, %162 : vector<8x32xf32>
    %198 = arith.mulf %193, %195 : vector<8x32xf32>
    %199 = arith.addf %197, %198 : vector<8x32xf32>
    %200 = math.tanh %199 : vector<8x32xf32>
    %201 = arith.mulf %196, %200 : vector<8x32xf32>
    %202 = vector.extract_strided_slice %12 {offsets = [40, 0], sizes = [8, 128], strides = [1, 1]} : vector<64x128xf32> to vector<8x128xf32>
    %cst_41 = arith.constant dense<0.000000e+00> : vector<8x128xf32>
    %203 = tpu.matmul %182, %1, %cst_41 {dimension_numbers = #tpu.dot_dimension_numbers<[1], [0], [0], [1], [0, 0, 1, 1], [], []>} : vector<8x32xf32>, vector<32x128xf32>, vector<8x128xf32> -> vector<8x128xf32>
    %204 = arith.addf %202, %203 : vector<8x128xf32>
    %205 = arith.negf %204 : vector<8x128xf32>
    %206 = math.exp %205 : vector<8x128xf32>
    %cst_42 = arith.constant 1.000000e+00 : f32
    %207 = vector.broadcast %cst_42 : f32 to vector<8x128xf32>
    %208 = arith.addf %207, %206 : vector<8x128xf32>
    %209 = arith.divf %207, %208 : vector<8x128xf32>
    %210 = math.tanh %204 : vector<8x128xf32>
    %211 = vector.extract_strided_slice %209 {offsets = [0, 0], sizes = [8, 32], strides = [1, 1]} : vector<8x128xf32> to vector<8x32xf32>
    %212 = vector.extract_strided_slice %209 {offsets = [0, 32], sizes = [8, 32], strides = [1, 1]} : vector<8x128xf32> to vector<8x32xf32>
    %213 = vector.extract_strided_slice %210 {offsets = [0, 64], sizes = [8, 32], strides = [1, 1]} : vector<8x128xf32> to vector<8x32xf32>
    %214 = vector.extract_strided_slice %209 {offsets = [0, 96], sizes = [8, 32], strides = [1, 1]} : vector<8x128xf32> to vector<8x32xf32>
    %215 = arith.mulf %212, %180 : vector<8x32xf32>
    %216 = arith.mulf %211, %213 : vector<8x32xf32>
    %217 = arith.addf %215, %216 : vector<8x32xf32>
    %218 = math.tanh %217 : vector<8x32xf32>
    %219 = arith.mulf %214, %218 : vector<8x32xf32>
    %cst_43 = arith.constant dense<0.000000e+00> : vector<8x128xf32>
    %220 = tpu.matmul %219, %2, %cst_43 {dimension_numbers = #tpu.dot_dimension_numbers<[1], [0], [0], [1], [0, 0, 1, 1], [], []>} : vector<8x32xf32>, vector<32x128xf32>, vector<8x128xf32> -> vector<8x128xf32>
    %cst_44 = arith.constant dense<0.000000e+00> : vector<8x128xf32>
    %221 = tpu.matmul %201, %3, %cst_44 {dimension_numbers = #tpu.dot_dimension_numbers<[1], [0], [0], [1], [0, 0, 1, 1], [], []>} : vector<8x32xf32>, vector<32x128xf32>, vector<8x128xf32> -> vector<8x128xf32>
    %222 = arith.addf %220, %221 : vector<8x128xf32>
    %223 = arith.addf %222, %5 : vector<8x128xf32>
    %224 = arith.negf %223 : vector<8x128xf32>
    %225 = math.exp %224 : vector<8x128xf32>
    %cst_45 = arith.constant 1.000000e+00 : f32
    %226 = vector.broadcast %cst_45 : f32 to vector<8x128xf32>
    %227 = arith.addf %226, %225 : vector<8x128xf32>
    %228 = arith.divf %226, %227 : vector<8x128xf32>
    %229 = math.tanh %223 : vector<8x128xf32>
    %230 = vector.extract_strided_slice %228 {offsets = [0, 0], sizes = [8, 32], strides = [1, 1]} : vector<8x128xf32> to vector<8x32xf32>
    %231 = vector.extract_strided_slice %228 {offsets = [0, 32], sizes = [8, 32], strides = [1, 1]} : vector<8x128xf32> to vector<8x32xf32>
    %232 = vector.extract_strided_slice %229 {offsets = [0, 64], sizes = [8, 32], strides = [1, 1]} : vector<8x128xf32> to vector<8x32xf32>
    %233 = vector.extract_strided_slice %228 {offsets = [0, 96], sizes = [8, 32], strides = [1, 1]} : vector<8x128xf32> to vector<8x32xf32>
    %234 = arith.mulf %231, %199 : vector<8x32xf32>
    %235 = arith.mulf %230, %232 : vector<8x32xf32>
    %236 = arith.addf %234, %235 : vector<8x32xf32>
    %237 = math.tanh %236 : vector<8x32xf32>
    %238 = arith.mulf %233, %237 : vector<8x32xf32>
    %239 = vector.extract_strided_slice %12 {offsets = [48, 0], sizes = [8, 128], strides = [1, 1]} : vector<64x128xf32> to vector<8x128xf32>
    %cst_46 = arith.constant dense<0.000000e+00> : vector<8x128xf32>
    %240 = tpu.matmul %219, %1, %cst_46 {dimension_numbers = #tpu.dot_dimension_numbers<[1], [0], [0], [1], [0, 0, 1, 1], [], []>} : vector<8x32xf32>, vector<32x128xf32>, vector<8x128xf32> -> vector<8x128xf32>
    %241 = arith.addf %239, %240 : vector<8x128xf32>
    %242 = arith.negf %241 : vector<8x128xf32>
    %243 = math.exp %242 : vector<8x128xf32>
    %cst_47 = arith.constant 1.000000e+00 : f32
    %244 = vector.broadcast %cst_47 : f32 to vector<8x128xf32>
    %245 = arith.addf %244, %243 : vector<8x128xf32>
    %246 = arith.divf %244, %245 : vector<8x128xf32>
    %247 = math.tanh %241 : vector<8x128xf32>
    %248 = vector.extract_strided_slice %246 {offsets = [0, 0], sizes = [8, 32], strides = [1, 1]} : vector<8x128xf32> to vector<8x32xf32>
    %249 = vector.extract_strided_slice %246 {offsets = [0, 32], sizes = [8, 32], strides = [1, 1]} : vector<8x128xf32> to vector<8x32xf32>
    %250 = vector.extract_strided_slice %247 {offsets = [0, 64], sizes = [8, 32], strides = [1, 1]} : vector<8x128xf32> to vector<8x32xf32>
    %251 = vector.extract_strided_slice %246 {offsets = [0, 96], sizes = [8, 32], strides = [1, 1]} : vector<8x128xf32> to vector<8x32xf32>
    %252 = arith.mulf %249, %217 : vector<8x32xf32>
    %253 = arith.mulf %248, %250 : vector<8x32xf32>
    %254 = arith.addf %252, %253 : vector<8x32xf32>
    %255 = math.tanh %254 : vector<8x32xf32>
    %256 = arith.mulf %251, %255 : vector<8x32xf32>
    %cst_48 = arith.constant dense<0.000000e+00> : vector<8x128xf32>
    %257 = tpu.matmul %256, %2, %cst_48 {dimension_numbers = #tpu.dot_dimension_numbers<[1], [0], [0], [1], [0, 0, 1, 1], [], []>} : vector<8x32xf32>, vector<32x128xf32>, vector<8x128xf32> -> vector<8x128xf32>
    %cst_49 = arith.constant dense<0.000000e+00> : vector<8x128xf32>
    %258 = tpu.matmul %238, %3, %cst_49 {dimension_numbers = #tpu.dot_dimension_numbers<[1], [0], [0], [1], [0, 0, 1, 1], [], []>} : vector<8x32xf32>, vector<32x128xf32>, vector<8x128xf32> -> vector<8x128xf32>
    %259 = arith.addf %257, %258 : vector<8x128xf32>
    %260 = arith.addf %259, %5 : vector<8x128xf32>
    %261 = arith.negf %260 : vector<8x128xf32>
    %262 = math.exp %261 : vector<8x128xf32>
    %cst_50 = arith.constant 1.000000e+00 : f32
    %263 = vector.broadcast %cst_50 : f32 to vector<8x128xf32>
    %264 = arith.addf %263, %262 : vector<8x128xf32>
    %265 = arith.divf %263, %264 : vector<8x128xf32>
    %266 = math.tanh %260 : vector<8x128xf32>
    %267 = vector.extract_strided_slice %265 {offsets = [0, 0], sizes = [8, 32], strides = [1, 1]} : vector<8x128xf32> to vector<8x32xf32>
    %268 = vector.extract_strided_slice %265 {offsets = [0, 32], sizes = [8, 32], strides = [1, 1]} : vector<8x128xf32> to vector<8x32xf32>
    %269 = vector.extract_strided_slice %266 {offsets = [0, 64], sizes = [8, 32], strides = [1, 1]} : vector<8x128xf32> to vector<8x32xf32>
    %270 = vector.extract_strided_slice %265 {offsets = [0, 96], sizes = [8, 32], strides = [1, 1]} : vector<8x128xf32> to vector<8x32xf32>
    %271 = arith.mulf %268, %236 : vector<8x32xf32>
    %272 = arith.mulf %267, %269 : vector<8x32xf32>
    %273 = arith.addf %271, %272 : vector<8x32xf32>
    %274 = math.tanh %273 : vector<8x32xf32>
    %275 = arith.mulf %270, %274 : vector<8x32xf32>
    %276 = vector.extract_strided_slice %12 {offsets = [56, 0], sizes = [8, 128], strides = [1, 1]} : vector<64x128xf32> to vector<8x128xf32>
    %cst_51 = arith.constant dense<0.000000e+00> : vector<8x128xf32>
    %277 = tpu.matmul %256, %1, %cst_51 {dimension_numbers = #tpu.dot_dimension_numbers<[1], [0], [0], [1], [0, 0, 1, 1], [], []>} : vector<8x32xf32>, vector<32x128xf32>, vector<8x128xf32> -> vector<8x128xf32>
    %278 = arith.addf %276, %277 : vector<8x128xf32>
    %279 = arith.negf %278 : vector<8x128xf32>
    %280 = math.exp %279 : vector<8x128xf32>
    %cst_52 = arith.constant 1.000000e+00 : f32
    %281 = vector.broadcast %cst_52 : f32 to vector<8x128xf32>
    %282 = arith.addf %281, %280 : vector<8x128xf32>
    %283 = arith.divf %281, %282 : vector<8x128xf32>
    %284 = math.tanh %278 : vector<8x128xf32>
    %285 = vector.extract_strided_slice %283 {offsets = [0, 0], sizes = [8, 32], strides = [1, 1]} : vector<8x128xf32> to vector<8x32xf32>
    %286 = vector.extract_strided_slice %283 {offsets = [0, 32], sizes = [8, 32], strides = [1, 1]} : vector<8x128xf32> to vector<8x32xf32>
    %287 = vector.extract_strided_slice %284 {offsets = [0, 64], sizes = [8, 32], strides = [1, 1]} : vector<8x128xf32> to vector<8x32xf32>
    %288 = vector.extract_strided_slice %283 {offsets = [0, 96], sizes = [8, 32], strides = [1, 1]} : vector<8x128xf32> to vector<8x32xf32>
    %289 = arith.mulf %286, %254 : vector<8x32xf32>
    %290 = arith.mulf %285, %287 : vector<8x32xf32>
    %291 = arith.addf %289, %290 : vector<8x32xf32>
    %292 = math.tanh %291 : vector<8x32xf32>
    %293 = arith.mulf %288, %292 : vector<8x32xf32>
    %cst_53 = arith.constant dense<0.000000e+00> : vector<8x128xf32>
    %294 = tpu.matmul %293, %2, %cst_53 {dimension_numbers = #tpu.dot_dimension_numbers<[1], [0], [0], [1], [0, 0, 1, 1], [], []>} : vector<8x32xf32>, vector<32x128xf32>, vector<8x128xf32> -> vector<8x128xf32>
    %cst_54 = arith.constant dense<0.000000e+00> : vector<8x128xf32>
    %295 = tpu.matmul %275, %3, %cst_54 {dimension_numbers = #tpu.dot_dimension_numbers<[1], [0], [0], [1], [0, 0, 1, 1], [], []>} : vector<8x32xf32>, vector<32x128xf32>, vector<8x128xf32> -> vector<8x128xf32>
    %296 = arith.addf %294, %295 : vector<8x128xf32>
    %297 = arith.addf %296, %5 : vector<8x128xf32>
    %298 = arith.negf %297 : vector<8x128xf32>
    %299 = math.exp %298 : vector<8x128xf32>
    %cst_55 = arith.constant 1.000000e+00 : f32
    %300 = vector.broadcast %cst_55 : f32 to vector<8x128xf32>
    %301 = arith.addf %300, %299 : vector<8x128xf32>
    %302 = arith.divf %300, %301 : vector<8x128xf32>
    %303 = math.tanh %297 : vector<8x128xf32>
    %304 = vector.extract_strided_slice %302 {offsets = [0, 0], sizes = [8, 32], strides = [1, 1]} : vector<8x128xf32> to vector<8x32xf32>
    %305 = vector.extract_strided_slice %302 {offsets = [0, 32], sizes = [8, 32], strides = [1, 1]} : vector<8x128xf32> to vector<8x32xf32>
    %306 = vector.extract_strided_slice %303 {offsets = [0, 64], sizes = [8, 32], strides = [1, 1]} : vector<8x128xf32> to vector<8x32xf32>
    %307 = vector.extract_strided_slice %302 {offsets = [0, 96], sizes = [8, 32], strides = [1, 1]} : vector<8x128xf32> to vector<8x32xf32>
    %308 = arith.mulf %305, %273 : vector<8x32xf32>
    %309 = arith.mulf %304, %306 : vector<8x32xf32>
    %310 = arith.addf %308, %309 : vector<8x32xf32>
    %311 = math.tanh %310 : vector<8x32xf32>
    %312 = arith.mulf %307, %311 : vector<8x32xf32>
    %cst_56 = arith.constant dense<0.000000e+00> : vector<8x128xf32>
    %313 = tpu.matmul %312, %6, %cst_56 {dimension_numbers = #tpu.dot_dimension_numbers<[1], [0], [0], [1], [0, 0, 1, 1], [], []>} : vector<8x32xf32>, vector<32x128xf32>, vector<8x128xf32> -> vector<8x128xf32>
    %314 = arith.addf %313, %7 : vector<8x128xf32>
    %cst_57 = arith.constant 0.000000e+00 : f32
    %315 = vector.broadcast %cst_57 : f32 to vector<8x128xf32>
    %316 = arith.maximumf %314, %315 : vector<8x128xf32>
    %317 = vector.extract_strided_slice %316 {offsets = [0, 0], sizes = [8, 16], strides = [1, 1]} : vector<8x128xf32> to vector<8x16xf32>
    %cst_58 = arith.constant dense<0.000000e+00> : vector<8x128xf32>
    %318 = tpu.matmul %317, %8, %cst_58 {dimension_numbers = #tpu.dot_dimension_numbers<[1], [0], [0], [1], [0, 0, 1, 1], [], []>} : vector<8x16xf32>, vector<16x128xf32>, vector<8x128xf32> -> vector<8x128xf32>
    %319 = arith.addf %318, %9 : vector<8x128xf32>
    %c0_59 = arith.constant 0 : index
    %c0_60 = arith.constant 0 : index
    %320 = vector.load %arg2[%c0_59, %c0_60] : memref<8x128xf32, #tpu.memory_space<vmem>>, vector<8x128xf32>
    tpu.vector_store %arg2[%c0_59, %c0_60], %319 {strides = array<i32>} : memref<8x128xf32, #tpu.memory_space<vmem>>, vector<8x128xf32>,
    return
  }
}

</mosaic_0001>

<llo_original>
// kernel: lstm_bike_predictor.1
$region0: #{lstm_bike_predictor.1}
  #allocation0 [shape = 'u32[]', space=smem, size = 0x4, offset = 0x4, fixed_abs, tag = 'smem constant byte address 0x4 - core index']
  #allocation1 [shape = 'u32[144,128]{1,0:T(1,128)}', space=vmem, size = 0x12000, scoped, tag = 'internal scratch']
  %s0 = inlined_call_operand.vmem [shape: f32[64,8], index: 0, kind: input, shape index: {}]
  %s1 = inlined_call_operand.vmem [shape: f32[240,128], index: 1, kind: input, shape index: {}]
  %s2 = inlined_call_operand.vmem [shape: f32[8,128], index: 2, kind: output, shape index: {}]
  %s3 = sld [smem:[#allocation0]]
  $region18: #{lstm_bike_predictor.1} parent=0
    _
  %s5 = ssub.s32 1, %s3
  %s6 = scalar_select 0, %s5, %s3
  // Predicated region
  $region2: #{lstm_bike_predictor.1} parent=0 // pred_check
    _
  $region3: #{lstm_bike_predictor.1} parent=0 // pred_check_branch
    %8 = sbr.rel (0) target = $region5
  $region4: #{lstm_bike_predictor.1} parent=0 // pred_region
    _
  $region5: #{lstm_bike_predictor.1} parent=0 // pred_fallthru
    _
  // Predicated region
  $region6: #{lstm_bike_predictor.1} parent=0 // pred_check
    _
  $region7: #{lstm_bike_predictor.1} parent=0 // pred_check_branch
    %10 = sbr.rel (0) target = $region9
  $region8: #{lstm_bike_predictor.1} parent=0 // pred_region
    _
  $region9: #{lstm_bike_predictor.1} parent=0 // pred_fallthru
    _
  %v11 = vld [vmem:[%s1] sm:$0xff]
  %v12 = vld [vmem:[%s1 + $0x8] sm:$0xff]
  %v13 = vld [vmem:[%s1 + $0x10] sm:$0xff]
  %v14 = vld [vmem:[%s1 + $0x18] sm:$0xff]
  %v15 = vld [vmem:[%s1 + $0x20] sm:$0xff]
  %v16 = vld [vmem:[%s1 + $0x28] sm:$0xff]
  %v17 = vld [vmem:[%s1 + $0x30] sm:$0xff]
  %v18 = vld [vmem:[%s1 + $0x38] sm:$0xff]
  %v19 = vld [vmem:[%s1 + $0x40] sm:$0xff]
  %v20 = vld [vmem:[%s1 + $0x48] sm:$0xff]
  %v21 = vld [vmem:[%s1 + $0x50] sm:$0xff]
  %v22 = vld [vmem:[%s1 + $0x58] sm:$0xff]
  %v23 = vld [vmem:[%s1 + $0x60] sm:$0xff]
  %v24 = vld [vmem:[%s1 + $0x68] sm:$0xff]
  %v25 = vld [vmem:[%s1 + $0x70] sm:$0xff]
  %v26 = vld [vmem:[%s1 + $0x78] sm:$0xff]
  %v27 = vld [vmem:[%s1 + $0x80] sm:$0xff]
  %v28 = vld [vmem:[%s1 + $0x88] sm:$0xff]
  %v29 = vld [vmem:[%s1 + $0x90] sm:$0xff]
  %v30 = vld [vmem:[%s1 + $0x98] sm:$0xff]
  %v31 = vld [vmem:[%s1 + $0xa0] sm:$0xff]
  %v32 = vld [vmem:[%s1 + $0xa8] sm:$0xff]
  %v33 = vld [vmem:[%s1 + $0xb0] sm:$0xff]
  %v34 = vld [vmem:[%s1 + $0xb8] sm:$0xff]
  %v35 = vld [vmem:[%s1 + $0xc0] sm:$0xff]
  %v36 = vld [vmem:[%s1 + $0xc8] sm:$0xff]
  %v37 = vld [vmem:[%s1 + $0xd0] sm:$0xff]
  %v38 = vld [vmem:[%s1 + $0xd8] sm:$0xff]
  %v39 = vld [vmem:[%s1 + $0xe0] sm:$0xff]
  %v40 = vld [vmem:[%s1 + $0xe8] sm:$0xff]
  %v41 = vld [vmem:[%s0] sm:$0xff]
  %v42 = vld [vmem:[%s0 + $0x8] sm:$0xff]
  %v43 = vld [vmem:[%s0 + $0x10] sm:$0xff]
  %v44 = vld [vmem:[%s0 + $0x18] sm:$0xff]
  %v45 = vld [vmem:[%s0 + $0x20] sm:$0xff]
  %v46 = vld [vmem:[%s0 + $0x28] sm:$0xff]
  %v47 = vld [vmem:[%s0 + $0x30] sm:$0xff]
  %v48 = vld [vmem:[%s0 + $0x38] sm:$0xff]
  %vm49 = vcmask 64512
  %v51 = vsel %vm49, %v41, 0
  %v54 = vsel %vm49, %v42, 0
  %v57 = vsel %vm49, %v43, 0
  %v60 = vsel %vm49, %v44, 0
  %v63 = vsel %vm49, %v45, 0
  %v66 = vsel %vm49, %v46, 0
  %v69 = vsel %vm49, %v47, 0
  %v72 = vsel %vm49, %v48, 0
  %74 = vmatprep.subr.mxu0 0.0
  %75 = vmatpush1.msra.mxu0 0.0
  %76 = vmatprep.subr.mxu0 0.0
  %77 = vmatpush1.msra.mxu0 0.0
  %78 = vmatprep.subr.mxu0 0.0
  %79 = vmatpush1.msra.mxu0 0.0
  %80 = vmatprep.subr.mxu0 0.0
  %81 = vmatpush1.msra.mxu0 0.0
  %82 = vmatprep.subr.mxu0 0.0
  %83 = vmatpush1.msra.mxu0 0.0
  %84 = vmatprep.subr.mxu0 0.0
  %85 = vmatpush1.msra.mxu0 0.0
  %86 = vmatprep.subr.mxu0 0.0
  %87 = vmatpush1.msra.mxu0 0.0
  %88 = vmatprep.subr.mxu0 0.0
  %89 = vmatpush1.msra.mxu0 0.0
  %90 = vmatprep.subr.mxu0 0.0
  %91 = vmatpush1.msra.mxu0 0.0
  %92 = vmatprep.subr.mxu0 0.0
  %93 = vmatpush1.msra.mxu0 0.0
  %94 = vmatprep.subr.mxu0 0.0
  %95 = vmatpush1.msra.mxu0 0.0
  %96 = vmatprep.subr.mxu0 0.0
  %97 = vmatpush1.msra.mxu0 0.0
  %98 = vmatprep.subr.mxu0 0.0
  %99 = vmatpush1.msra.mxu0 0.0
  %100 = vmatprep.subr.mxu0 0.0
  %101 = vmatpush1.msra.mxu0 0.0
  %102 = vmatprep.subr.mxu0 0.0
  %103 = vmatpush1.msra.mxu0 0.0
  %104 = vmatprep.subr.mxu0 0.0
  %105 = vmatpush1.msra.mxu0 %v11
  %106 = vmatprep.subr.mxu0 0.0
  %107 = vmatpush2.msra.mxu0 0.0
  %108 = vmatprep.subr.mxu0 0.0
  %109 = vmatpush2.msra.mxu0 0.0
  %110 = vmatprep.subr.mxu0 0.0
  %111 = vmatpush2.msra.mxu0 0.0
  %112 = vmatprep.subr.mxu0 0.0
  %113 = vmatpush2.msra.mxu0 0.0
  %114 = vmatprep.subr.mxu0 0.0
  %115 = vmatpush2.msra.mxu0 0.0
  %116 = vmatprep.subr.mxu0 0.0
  %117 = vmatpush2.msra.mxu0 0.0
  %118 = vmatprep.subr.mxu0 0.0
  %119 = vmatpush2.msra.mxu0 0.0
  %120 = vmatprep.subr.mxu0 0.0
  %121 = vmatpush2.msra.mxu0 0.0
  %122 = vmatprep.subr.mxu0 0.0
  %123 = vmatpush2.msra.mxu0 0.0
  %124 = vmatprep.subr.mxu0 0.0
  %125 = vmatpush2.msra.mxu0 0.0
  %126 = vmatprep.subr.mxu0 0.0
  %127 = vmatpush2.msra.mxu0 0.0
  %128 = vmatprep.subr.mxu0 0.0
  %129 = vmatpush2.msra.mxu0 0.0
  %130 = vmatprep.subr.mxu0 0.0
  %131 = vmatpush2.msra.mxu0 0.0
  %132 = vmatprep.subr.mxu0 0.0
  %133 = vmatpush2.msra.mxu0 0.0
  %134 = vmatprep.subr.mxu0 0.0
  %135 = vmatpush2.msra.mxu0 0.0
  %136 = vmatprep.subr.mxu0 0.0
  %137 = vmatpush2.msra.mxu0 0.0
  %138 = vmatprep.mubr.f32.mxu0 0.0
  %139 = vmatmul.mubr.f32.gmra.mxu0 %v51
  %v140 = vpop.f32.mrf.mxu0
  %v141 = vadd.f32 %v24, %v140
  %v142 = vpop.f32.mrf.mxu0
  %143 = vmatprep.mubr.f32.mxu0 0.0
  %144 = vmatmul.mubr.f32.gmra.mxu0 %v54
  %v145 = vpop.f32.mrf.mxu0
  %v146 = vadd.f32 %v25, %v145
  %v147 = vpop.f32.mrf.mxu0
  %148 = vmatprep.mubr.f32.mxu0 0.0
  %149 = vmatmul.mubr.f32.gmra.mxu0 %v57
  %v150 = vpop.f32.mrf.mxu0
  %v151 = vadd.f32 %v26, %v150
  %v152 = vpop.f32.mrf.mxu0
  %153 = vmatprep.mubr.f32.mxu0 0.0
  %154 = vmatmul.mubr.f32.gmra.mxu0 %v60
  %v155 = vpop.f32.mrf.mxu0
  %v156 = vadd.f32 %v27, %v155
  %v157 = vpop.f32.mrf.mxu0
  %158 = vmatprep.mubr.f32.mxu0 0.0
  %159 = vmatmul.mubr.f32.gmra.mxu0 %v63
  %v160 = vpop.f32.mrf.mxu0
  %v161 = vadd.f32 %v28, %v160
  %v162 = vpop.f32.mrf.mxu0
  %163 = vmatprep.mubr.f32.mxu0 0.0
  %164 = vmatmul.mubr.f32.gmra.mxu0 %v66
  %v165 = vpop.f32.mrf.mxu0
  %v166 = vadd.f32 %v29, %v165
  %v167 = vpop.f32.mrf.mxu0
  %168 = vmatprep.mubr.f32.mxu0 0.0
  %169 = vmatmul.mubr.f32.gmra.mxu0 %v69
  %v170 = vpop.f32.mrf.mxu0
  %v171 = vadd.f32 %v30, %v170
  %v172 = vpop.f32.mrf.mxu0
  %173 = vmatprep.mubr.f32.mxu0 0.0
  %174 = vmatmul.mubr.f32.gmra.mxu0 %v72
  %v175 = vpop.f32.mrf.mxu0
  %v176 = vadd.f32 %v31, %v175
  %v177 = vpop.f32.mrf.mxu0
  %178 = vdwg.mxu0
  %vm179 = vcmask 261120
  %v181 = vsel %vm179, 0.0, 0
  %183 = vmatprep.subr.mxu0 0.0
  %184 = vmatpush1.msra.mxu0 0.0
  %185 = vmatprep.subr.mxu0 0.0
  %186 = vmatpush1.msra.mxu0 0.0
  %187 = vmatprep.subr.mxu0 0.0
  %188 = vmatpush1.msra.mxu0 0.0
  %189 = vmatprep.subr.mxu0 0.0
  %190 = vmatpush1.msra.mxu0 0.0
  %191 = vmatprep.subr.mxu0 0.0
  %192 = vmatpush1.msra.mxu0 0.0
  %193 = vmatprep.subr.mxu0 0.0
  %194 = vmatpush1.msra.mxu0 0.0
  %195 = vmatprep.subr.mxu0 0.0
  %196 = vmatpush1.msra.mxu0 0.0
  %197 = vmatprep.subr.mxu0 0.0
  %198 = vmatpush1.msra.mxu0 0.0
  %199 = vmatprep.subr.mxu0 0.0
  %200 = vmatpush1.msra.mxu0 0.0
  %201 = vmatprep.subr.mxu0 0.0
  %202 = vmatpush1.msra.mxu0 0.0
  %203 = vmatprep.subr.mxu0 0.0
  %204 = vmatpush1.msra.mxu0 0.0
  %205 = vmatprep.subr.mxu0 0.0
  %206 = vmatpush1.msra.mxu0 0.0
  %207 = vmatprep.subr.mxu0 0.0
  %208 = vmatpush1.msra.mxu0 %v15
  %209 = vmatprep.subr.mxu0 0.0
  %210 = vmatpush1.msra.mxu0 %v14
  %211 = vmatprep.subr.mxu0 0.0
  %212 = vmatpush1.msra.mxu0 %v13
  %213 = vmatprep.subr.mxu0 0.0
  %214 = vmatpush1.msra.mxu0 %v12
  %215 = vmatprep.subr.mxu0 0.0
  %216 = vmatpush2.msra.mxu0 0.0
  %217 = vmatprep.subr.mxu0 0.0
  %218 = vmatpush2.msra.mxu0 0.0
  %219 = vmatprep.subr.mxu0 0.0
  %220 = vmatpush2.msra.mxu0 0.0
  %221 = vmatprep.subr.mxu0 0.0
  %222 = vmatpush2.msra.mxu0 0.0
  %223 = vmatprep.subr.mxu0 0.0
  %224 = vmatpush2.msra.mxu0 0.0
  %225 = vmatprep.subr.mxu0 0.0
  %226 = vmatpush2.msra.mxu0 0.0
  %227 = vmatprep.subr.mxu0 0.0
  %228 = vmatpush2.msra.mxu0 0.0
  %229 = vmatprep.subr.mxu0 0.0
  %230 = vmatpush2.msra.mxu0 0.0
  %231 = vmatprep.subr.mxu0 0.0
  %232 = vmatpush2.msra.mxu0 0.0
  %233 = vmatprep.subr.mxu0 0.0
  %234 = vmatpush2.msra.mxu0 0.0
  %235 = vmatprep.subr.mxu0 0.0
  %236 = vmatpush2.msra.mxu0 0.0
  %237 = vmatprep.subr.mxu0 0.0
  %238 = vmatpush2.msra.mxu0 0.0
  %239 = vmatprep.subr.mxu0 0.0
  %240 = vmatpush2.msra.mxu0 0.0
  %241 = vmatprep.subr.mxu0 0.0
  %242 = vmatpush2.msra.mxu0 0.0
  %243 = vmatprep.subr.mxu0 0.0
  %244 = vmatpush2.msra.mxu0 0.0
  %245 = vmatprep.subr.mxu0 0.0
  %246 = vmatpush2.msra.mxu0 0.0
  %247 = vmatprep.mubr.f32.mxu0 0.0
  %248 = vmatmul.mubr.f32.gmra.mxu0 %v181
  %v249 = vpop.f32.mrf.mxu0
  %v250 = vadd.f32 0.0, %v249
  %v251 = vpop.f32.mrf.mxu0
  %252 = vdwg.mxu0
  %v253 = vadd.f32 %v141, %v250
  %v254 = vxor.u32 %v253, 2147483648
  %v255 = vmul.f32 %v254, 1.442695
  %v256 = vpow.pop %v255
  %v257 = vadd.f32 %v256, 1.0
  %v258 = vrcp.pop %v257
  %v259 = vmul.f32 1.0, %v258
  %v260 = vtanh.pop %v253
  %v261 = vmul.f32 %v259, 0.0
  %263 = vrot.lane.b32.xlu0 %v260, 64
  %v264 = vpop.permute.xlu0 %263
  %v266 = vmul.f32 %v259, %v264
  %268 = vrot.lane.b32.xlu0 %v266, 32
  %v269 = vpop.permute.xlu0 %268
  %v271 = vadd.f32 %v261, %v269
  %v272 = vtanh.pop %v271
  %274 = vrot.lane.b32.xlu0 %v272, 64
  %v275 = vpop.permute.xlu0 %274
  %v277 = vmul.f32 %v259, %v275
  %278 = vmatprep.subr.mxu0 0.0
  %279 = vmatpush1.msra.mxu0 0.0
  %280 = vmatprep.subr.mxu0 0.0
  %281 = vmatpush1.msra.mxu0 0.0
  %282 = vmatprep.subr.mxu0 0.0
  %283 = vmatpush1.msra.mxu0 0.0
  %284 = vmatprep.subr.mxu0 0.0
  %285 = vmatpush1.msra.mxu0 0.0
  %286 = vmatprep.subr.mxu0 0.0
  %287 = vmatpush1.msra.mxu0 0.0
  %288 = vmatprep.subr.mxu0 0.0
  %289 = vmatpush1.msra.mxu0 0.0
  %290 = vmatprep.subr.mxu0 0.0
  %291 = vmatpush1.msra.mxu0 0.0
  %292 = vmatprep.subr.mxu0 0.0
  %293 = vmatpush1.msra.mxu0 0.0
  %294 = vmatprep.subr.mxu0 0.0
  %295 = vmatpush1.msra.mxu0 0.0
  %296 = vmatprep.subr.mxu0 0.0
  %297 = vmatpush1.msra.mxu0 0.0
  %298 = vmatprep.subr.mxu0 0.0
  %299 = vmatpush1.msra.mxu0 0.0
  %300 = vmatprep.subr.mxu0 0.0
  %301 = vmatpush1.msra.mxu0 0.0
  %302 = vmatprep.subr.mxu0 0.0
  %303 = vmatpush1.msra.mxu0 %v23
  %304 = vmatprep.subr.mxu0 0.0
  %305 = vmatpush1.msra.mxu0 %v22
  %306 = vmatprep.subr.mxu0 0.0
  %307 = vmatpush1.msra.mxu0 %v21
  %308 = vmatprep.subr.mxu0 0.0
  %309 = vmatpush1.msra.mxu0 %v20
  %310 = vmatprep.subr.mxu0 0.0
  %311 = vmatpush2.msra.mxu0 0.0
  %312 = vmatprep.subr.mxu0 0.0
  %313 = vmatpush2.msra.mxu0 0.0
  %314 = vmatprep.subr.mxu0 0.0
  %315 = vmatpush2.msra.mxu0 0.0
  %316 = vmatprep.subr.mxu0 0.0
  %317 = vmatpush2.msra.mxu0 0.0
  %318 = vmatprep.subr.mxu0 0.0
  %319 = vmatpush2.msra.mxu0 0.0
  %320 = vmatprep.subr.mxu0 0.0
  %321 = vmatpush2.msra.mxu0 0.0
  %322 = vmatprep.subr.mxu0 0.0
  %323 = vmatpush2.msra.mxu0 0.0
  %324 = vmatprep.subr.mxu0 0.0
  %325 = vmatpush2.msra.mxu0 0.0
  %326 = vmatprep.subr.mxu0 0.0
  %327 = vmatpush2.msra.mxu0 0.0
  %328 = vmatprep.subr.mxu0 0.0
  %329 = vmatpush2.msra.mxu0 0.0
  %330 = vmatprep.subr.mxu0 0.0
  %331 = vmatpush2.msra.mxu0 0.0
  %332 = vmatprep.subr.mxu0 0.0
  %333 = vmatpush2.msra.mxu0 0.0
  %334 = vmatprep.subr.mxu0 0.0
  %335 = vmatpush2.msra.mxu0 0.0
  %336 = vmatprep.subr.mxu0 0.0
  %337 = vmatpush2.msra.mxu0 0.0
  %338 = vmatprep.subr.mxu0 0.0
  %339 = vmatpush2.msra.mxu0 0.0
  %340 = vmatprep.subr.mxu0 0.0
  %341 = vmatpush2.msra.mxu0 0.0
  %342 = vmatprep.mubr.f32.mxu0 0.0
  %343 = vmatmul.mubr.f32.gmra.mxu0 %v181
  %v344 = vpop.f32.mrf.mxu0
  %v345 = vadd.f32 0.0, %v344
  %v346 = vpop.f32.mrf.mxu0
  %347 = vdwg.mxu0
  %349 = vrot.lane.b32.xlu0 %v277, 32
  %v350 = vpop.permute.xlu0 %349
  %v351 = vsel %vm179, %v350, 0
  %353 = vmatprep.subr.mxu0 0.0
  %354 = vmatpush1.msra.mxu0 0.0
  %355 = vmatprep.subr.mxu0 0.0
  %356 = vmatpush1.msra.mxu0 0.0
  %357 = vmatprep.subr.mxu0 0.0
  %358 = vmatpush1.msra.mxu0 0.0
  %359 = vmatprep.subr.mxu0 0.0
  %360 = vmatpush1.msra.mxu0 0.0
  %361 = vmatprep.subr.mxu0 0.0
  %362 = vmatpush1.msra.mxu0 0.0
  %363 = vmatprep.subr.mxu0 0.0
  %364 = vmatpush1.msra.mxu0 0.0
  %365 = vmatprep.subr.mxu0 0.0
  %366 = vmatpush1.msra.mxu0 0.0
  %367 = vmatprep.subr.mxu0 0.0
  %368 = vmatpush1.msra.mxu0 0.0
  %369 = vmatprep.subr.mxu0 0.0
  %370 = vmatpush1.msra.mxu0 0.0
  %371 = vmatprep.subr.mxu0 0.0
  %372 = vmatpush1.msra.mxu0 0.0
  %373 = vmatprep.subr.mxu0 0.0
  %374 = vmatpush1.msra.mxu0 0.0
  %375 = vmatprep.subr.mxu0 0.0
  %376 = vmatpush1.msra.mxu0 0.0
  %377 = vmatprep.subr.mxu0 0.0
  %378 = vmatpush1.msra.mxu0 %v19
  %379 = vmatprep.subr.mxu0 0.0
  %380 = vmatpush1.msra.mxu0 %v18
  %381 = vmatprep.subr.mxu0 0.0
  %382 = vmatpush1.msra.mxu0 %v17
  %383 = vmatprep.subr.mxu0 0.0
  %384 = vmatpush1.msra.mxu0 %v16
  %385 = vmatprep.subr.mxu0 0.0
  %386 = vmatpush2.msra.mxu0 0.0
  %387 = vmatprep.subr.mxu0 0.0
  %388 = vmatpush2.msra.mxu0 0.0
  %389 = vmatprep.subr.mxu0 0.0
  %390 = vmatpush2.msra.mxu0 0.0
  %391 = vmatprep.subr.mxu0 0.0
  %392 = vmatpush2.msra.mxu0 0.0
  %393 = vmatprep.subr.mxu0 0.0
  %394 = vmatpush2.msra.mxu0 0.0
  %395 = vmatprep.subr.mxu0 0.0
  %396 = vmatpush2.msra.mxu0 0.0
  %397 = vmatprep.subr.mxu0 0.0
  %398 = vmatpush2.msra.mxu0 0.0
  %399 = vmatprep.subr.mxu0 0.0
  %400 = vmatpush2.msra.mxu0 0.0
  %401 = vmatprep.subr.mxu0 0.0
  %402 = vmatpush2.msra.mxu0 0.0
  %403 = vmatprep.subr.mxu0 0.0
  %404 = vmatpush2.msra.mxu0 0.0
  %405 = vmatprep.subr.mxu0 0.0
  %406 = vmatpush2.msra.mxu0 0.0
  %407 = vmatprep.subr.mxu0 0.0
  %408 = vmatpush2.msra.mxu0 0.0
  %409 = vmatprep.subr.mxu0 0.0
  %410 = vmatpush2.msra.mxu0 0.0
  %411 = vmatprep.subr.mxu0 0.0
  %412 = vmatpush2.msra.mxu0 0.0
  %413 = vmatprep.subr.mxu0 0.0
  %414 = vmatpush2.msra.mxu0 0.0
  %415 = vmatprep.subr.mxu0 0.0
  %416 = vmatpush2.msra.mxu0 0.0
  %417 = vmatprep.mubr.f32.mxu0 0.0
  %418 = vmatmul.mubr.f32.gmra.mxu0 %v351
  %v419 = vpop.f32.mrf.mxu0
  %v420 = vadd.f32 %v345, %v419
  %v421 = vpop.f32.mrf.mxu0
  %422 = vdwg.mxu0
  %v423 = vadd.f32 %v420, %v32
  %v424 = vxor.u32 %v423, 2147483648
  %v425 = vmul.f32 %v424, 1.442695
  %v426 = vpow.pop %v425
  %v427 = vadd.f32 %v426, 1.0
  %v428 = vrcp.pop %v427
  %v429 = vmul.f32 1.0, %v428
  %v430 = vtanh.pop %v423
  %v431 = vmul.f32 %v429, 0.0
  %433 = vrot.lane.b32.xlu0 %v430, 64
  %v434 = vpop.permute.xlu0 %433
  %v436 = vmul.f32 %v429, %v434
  %438 = vrot.lane.b32.xlu0 %v436, 32
  %v439 = vpop.permute.xlu0 %438
  %v441 = vadd.f32 %v431, %v439
  %v442 = vtanh.pop %v441
  %444 = vrot.lane.b32.xlu0 %v442, 64
  %v445 = vpop.permute.xlu0 %444
  %v447 = vmul.f32 %v429, %v445
  %448 = vmatprep.subr.mxu0 0.0
  %449 = vmatpush1.msra.mxu0 0.0
  %450 = vmatprep.subr.mxu0 0.0
  %451 = vmatpush1.msra.mxu0 0.0
  %452 = vmatprep.subr.mxu0 0.0
  %453 = vmatpush1.msra.mxu0 0.0
  %454 = vmatprep.subr.mxu0 0.0
  %455 = vmatpush1.msra.mxu0 0.0
  %456 = vmatprep.subr.mxu0 0.0
  %457 = vmatpush1.msra.mxu0 0.0
  %458 = vmatprep.subr.mxu0 0.0
  %459 = vmatpush1.msra.mxu0 0.0
  %460 = vmatprep.subr.mxu0 0.0
  %461 = vmatpush1.msra.mxu0 0.0
  %462 = vmatprep.subr.mxu0 0.0
  %463 = vmatpush1.msra.mxu0 0.0
  %464 = vmatprep.subr.mxu0 0.0
  %465 = vmatpush1.msra.mxu0 0.0
  %466 = vmatprep.subr.mxu0 0.0
  %467 = vmatpush1.msra.mxu0 0.0
  %468 = vmatprep.subr.mxu0 0.0
  %469 = vmatpush1.msra.mxu0 0.0
  %470 = vmatprep.subr.mxu0 0.0
  %471 = vmatpush1.msra.mxu0 0.0
  %472 = vmatprep.subr.mxu0 0.0
  %473 = vmatpush1.msra.mxu0 %v15
  %474 = vmatprep.subr.mxu0 0.0
  %475 = vmatpush1.msra.mxu0 %v14
  %476 = vmatprep.subr.mxu0 0.0
  %477 = vmatpush1.msra.mxu0 %v13
  %478 = vmatprep.subr.mxu0 0.0
  %479 = vmatpush1.msra.mxu0 %v12
  %480 = vmatprep.subr.mxu0 0.0
  %481 = vmatpush2.msra.mxu0 0.0
  %482 = vmatprep.subr.mxu0 0.0
  %483 = vmatpush2.msra.mxu0 0.0
  %484 = vmatprep.subr.mxu0 0.0
  %485 = vmatpush2.msra.mxu0 0.0
  %486 = vmatprep.subr.mxu0 0.0
  %487 = vmatpush2.msra.mxu0 0.0
  %488 = vmatprep.subr.mxu0 0.0
  %489 = vmatpush2.msra.mxu0 0.0
  %490 = vmatprep.subr.mxu0 0.0
  %491 = vmatpush2.msra.mxu0 0.0
  %492 = vmatprep.subr.mxu0 0.0
  %493 = vmatpush2.msra.mxu0 0.0
  %494 = vmatprep.subr.mxu0 0.0
  %495 = vmatpush2.msra.mxu0 0.0
  %496 = vmatprep.subr.mxu0 0.0
  %497 = vmatpush2.msra.mxu0 0.0
  %498 = vmatprep.subr.mxu0 0.0
  %499 = vmatpush2.msra.mxu0 0.0
  %500 = vmatprep.subr.mxu0 0.0
  %501 = vmatpush2.msra.mxu0 0.0
  %502 = vmatprep.subr.mxu0 0.0
  %503 = vmatpush2.msra.mxu0 0.0
  %504 = vmatprep.subr.mxu0 0.0
  %505 = vmatpush2.msra.mxu0 0.0
  %506 = vmatprep.subr.mxu0 0.0
  %507 = vmatpush2.msra.mxu0 0.0
  %508 = vmatprep.subr.mxu0 0.0
  %509 = vmatpush2.msra.mxu0 0.0
  %510 = vmatprep.subr.mxu0 0.0
  %511 = vmatpush2.msra.mxu0 0.0
  %512 = vmatprep.mubr.f32.mxu0 0.0
  %513 = vmatmul.mubr.f32.gmra.mxu0 %v351
  %v514 = vpop.f32.mrf.mxu0
  %v515 = vadd.f32 0.0, %v514
  %v516 = vpop.f32.mrf.mxu0
  %517 = vdwg.mxu0
  %v518 = vadd.f32 %v146, %v515
  %v519 = vxor.u32 %v518, 2147483648
  %v520 = vmul.f32 %v519, 1.442695
  %v521 = vpow.pop %v520
  %v522 = vadd.f32 %v521, 1.0
  %v523 = vrcp.pop %v522
  %v524 = vmul.f32 1.0, %v523
  %v525 = vtanh.pop %v518
  %v526 = vmul.f32 %v524, %v271
  %528 = vrot.lane.b32.xlu0 %v525, 64
  %v529 = vpop.permute.xlu0 %528
  %v531 = vmul.f32 %v524, %v529
  %533 = vrot.lane.b32.xlu0 %v531, 32
  %v534 = vpop.permute.xlu0 %533
  %v536 = vadd.f32 %v526, %v534
  %v537 = vtanh.pop %v536
  %539 = vrot.lane.b32.xlu0 %v537, 64
  %v540 = vpop.permute.xlu0 %539
  %v542 = vmul.f32 %v524, %v540
  %544 = vrot.lane.b32.xlu0 %v447, 32
  %v545 = vpop.permute.xlu0 %544
  %v546 = vsel %vm179, %v545, 0
  %548 = vmatprep.subr.mxu0 0.0
  %549 = vmatpush1.msra.mxu0 0.0
  %550 = vmatprep.subr.mxu0 0.0
  %551 = vmatpush1.msra.mxu0 0.0
  %552 = vmatprep.subr.mxu0 0.0
  %553 = vmatpush1.msra.mxu0 0.0
  %554 = vmatprep.subr.mxu0 0.0
  %555 = vmatpush1.msra.mxu0 0.0
  %556 = vmatprep.subr.mxu0 0.0
  %557 = vmatpush1.msra.mxu0 0.0
  %558 = vmatprep.subr.mxu0 0.0
  %559 = vmatpush1.msra.mxu0 0.0
  %560 = vmatprep.subr.mxu0 0.0
  %561 = vmatpush1.msra.mxu0 0.0
  %562 = vmatprep.subr.mxu0 0.0
  %563 = vmatpush1.msra.mxu0 0.0
  %564 = vmatprep.subr.mxu0 0.0
  %565 = vmatpush1.msra.mxu0 0.0
  %566 = vmatprep.subr.mxu0 0.0
  %567 = vmatpush1.msra.mxu0 0.0
  %568 = vmatprep.subr.mxu0 0.0
  %569 = vmatpush1.msra.mxu0 0.0
  %570 = vmatprep.subr.mxu0 0.0
  %571 = vmatpush1.msra.mxu0 0.0
  %572 = vmatprep.subr.mxu0 0.0
  %573 = vmatpush1.msra.mxu0 %v23
  %574 = vmatprep.subr.mxu0 0.0
  %575 = vmatpush1.msra.mxu0 %v22
  %576 = vmatprep.subr.mxu0 0.0
  %577 = vmatpush1.msra.mxu0 %v21
  %578 = vmatprep.subr.mxu0 0.0
  %579 = vmatpush1.msra.mxu0 %v20
  %580 = vmatprep.subr.mxu0 0.0
  %581 = vmatpush2.msra.mxu0 0.0
  %582 = vmatprep.subr.mxu0 0.0
  %583 = vmatpush2.msra.mxu0 0.0
  %584 = vmatprep.subr.mxu0 0.0
  %585 = vmatpush2.msra.mxu0 0.0
  %586 = vmatprep.subr.mxu0 0.0
  %587 = vmatpush2.msra.mxu0 0.0
  %588 = vmatprep.subr.mxu0 0.0
  %589 = vmatpush2.msra.mxu0 0.0
  %590 = vmatprep.subr.mxu0 0.0
  %591 = vmatpush2.msra.mxu0 0.0
  %592 = vmatprep.subr.mxu0 0.0
  %593 = vmatpush2.msra.mxu0 0.0
  %594 = vmatprep.subr.mxu0 0.0
  %595 = vmatpush2.msra.mxu0 0.0
  %596 = vmatprep.subr.mxu0 0.0
  %597 = vmatpush2.msra.mxu0 0.0
  %598 = vmatprep.subr.mxu0 0.0
  %599 = vmatpush2.msra.mxu0 0.0
  %600 = vmatprep.subr.mxu0 0.0
  %601 = vmatpush2.msra.mxu0 0.0
  %602 = vmatprep.subr.mxu0 0.0
  %603 = vmatpush2.msra.mxu0 0.0
  %604 = vmatprep.subr.mxu0 0.0
  %605 = vmatpush2.msra.mxu0 0.0
  %606 = vmatprep.subr.mxu0 0.0
  %607 = vmatpush2.msra.mxu0 0.0
  %608 = vmatprep.subr.mxu0 0.0
  %609 = vmatpush2.msra.mxu0 0.0
  %610 = vmatprep.subr.mxu0 0.0
  %611 = vmatpush2.msra.mxu0 0.0
  %612 = vmatprep.mubr.f32.mxu0 0.0
  %613 = vmatmul.mubr.f32.gmra.mxu0 %v546
  %v614 = vpop.f32.mrf.mxu0
  %v615 = vadd.f32 0.0, %v614
  %v616 = vpop.f32.mrf.mxu0
  %617 = vdwg.mxu0
  %619 = vrot.lane.b32.xlu0 %v542, 32
  %v620 = vpop.permute.xlu0 %619
  %v621 = vsel %vm179, %v620, 0
  %623 = vmatprep.subr.mxu0 0.0
  %624 = vmatpush1.msra.mxu0 0.0
  %625 = vmatprep.subr.mxu0 0.0
  %626 = vmatpush1.msra.mxu0 0.0
  %627 = vmatprep.subr.mxu0 0.0
  %628 = vmatpush1.msra.mxu0 0.0
  %629 = vmatprep.subr.mxu0 0.0
  %630 = vmatpush1.msra.mxu0 0.0
  %631 = vmatprep.subr.mxu0 0.0
  %632 = vmatpush1.msra.mxu0 0.0
  %633 = vmatprep.subr.mxu0 0.0
  %634 = vmatpush1.msra.mxu0 0.0
  %635 = vmatprep.subr.mxu0 0.0
  %636 = vmatpush1.msra.mxu0 0.0
  %637 = vmatprep.subr.mxu0 0.0
  %638 = vmatpush1.msra.mxu0 0.0
  %639 = vmatprep.subr.mxu0 0.0
  %640 = vmatpush1.msra.mxu0 0.0
  %641 = vmatprep.subr.mxu0 0.0
  %642 = vmatpush1.msra.mxu0 0.0
  %643 = vmatprep.subr.mxu0 0.0
  %644 = vmatpush1.msra.mxu0 0.0
  %645 = vmatprep.subr.mxu0 0.0
  %646 = vmatpush1.msra.mxu0 0.0
  %647 = vmatprep.subr.mxu0 0.0
  %648 = vmatpush1.msra.mxu0 %v19
  %649 = vmatprep.subr.mxu0 0.0
  %650 = vmatpush1.msra.mxu0 %v18
  %651 = vmatprep.subr.mxu0 0.0
  %652 = vmatpush1.msra.mxu0 %v17
  %653 = vmatprep.subr.mxu0 0.0
  %654 = vmatpush1.msra.mxu0 %v16
  %655 = vmatprep.subr.mxu0 0.0
  %656 = vmatpush2.msra.mxu0 0.0
  %657 = vmatprep.subr.mxu0 0.0
  %658 = vmatpush2.msra.mxu0 0.0
  %659 = vmatprep.subr.mxu0 0.0
  %660 = vmatpush2.msra.mxu0 0.0
  %661 = vmatprep.subr.mxu0 0.0
  %662 = vmatpush2.msra.mxu0 0.0
  %663 = vmatprep.subr.mxu0 0.0
  %664 = vmatpush2.msra.mxu0 0.0
  %665 = vmatprep.subr.mxu0 0.0
  %666 = vmatpush2.msra.mxu0 0.0
  %667 = vmatprep.subr.mxu0 0.0
  %668 = vmatpush2.msra.mxu0 0.0
  %669 = vmatprep.subr.mxu0 0.0
  %670 = vmatpush2.msra.mxu0 0.0
  %671 = vmatprep.subr.mxu0 0.0
  %672 = vmatpush2.msra.mxu0 0.0
  %673 = vmatprep.subr.mxu0 0.0
  %674 = vmatpush2.msra.mxu0 0.0
  %675 = vmatprep.subr.mxu0 0.0
  %676 = vmatpush2.msra.mxu0 0.0
  %677 = vmatprep.subr.mxu0 0.0
  %678 = vmatpush2.msra.mxu0 0.0
  %679 = vmatprep.subr.mxu0 0.0
  %680 = vmatpush2.msra.mxu0 0.0
  %681 = vmatprep.subr.mxu0 0.0
  %682 = vmatpush2.msra.mxu0 0.0
  %683 = vmatprep.subr.mxu0 0.0
  %684 = vmatpush2.msra.mxu0 0.0
  %685 = vmatprep.subr.mxu0 0.0
  %686 = vmatpush2.msra.mxu0 0.0
  %687 = vmatprep.mubr.f32.mxu0 0.0
  %688 = vmatmul.mubr.f32.gmra.mxu0 %v621
  %v689 = vpop.f32.mrf.mxu0
  %v690 = vadd.f32 %v615, %v689
  %v691 = vpop.f32.mrf.mxu0
  %692 = vdwg.mxu0
  %v693 = vadd.f32 %v690, %v32
  %v694 = vxor.u32 %v693, 2147483648
  %v695 = vmul.f32 %v694, 1.442695
  %v696 = vpow.pop %v695
  %v697 = vadd.f32 %v696, 1.0
  %v698 = vrcp.pop %v697
  %v699 = vmul.f32 1.0, %v698
  %v700 = vtanh.pop %v693
  %v701 = vmul.f32 %v699, %v441
  %703 = vrot.lane.b32.xlu0 %v700, 64
  %v704 = vpop.permute.xlu0 %703
  %v706 = vmul.f32 %v699, %v704
  %708 = vrot.lane.b32.xlu0 %v706, 32
  %v709 = vpop.permute.xlu0 %708
  %v711 = vadd.f32 %v701, %v709
  %v712 = vtanh.pop %v711
  %714 = vrot.lane.b32.xlu0 %v712, 64
  %v715 = vpop.permute.xlu0 %714
  %v717 = vmul.f32 %v699, %v715
  %718 = vmatprep.subr.mxu0 0.0
  %719 = vmatpush1.msra.mxu0 0.0
  %720 = vmatprep.subr.mxu0 0.0
  %721 = vmatpush1.msra.mxu0 0.0
  %722 = vmatprep.subr.mxu0 0.0
  %723 = vmatpush1.msra.mxu0 0.0
  %724 = vmatprep.subr.mxu0 0.0
  %725 = vmatpush1.msra.mxu0 0.0
  %726 = vmatprep.subr.mxu0 0.0
  %727 = vmatpush1.msra.mxu0 0.0
  %728 = vmatprep.subr.mxu0 0.0
  %729 = vmatpush1.msra.mxu0 0.0
  %730 = vmatprep.subr.mxu0 0.0
  %731 = vmatpush1.msra.mxu0 0.0
  %732 = vmatprep.subr.mxu0 0.0
  %733 = vmatpush1.msra.mxu0 0.0
  %734 = vmatprep.subr.mxu0 0.0
  %735 = vmatpush1.msra.mxu0 0.0
  %736 = vmatprep.subr.mxu0 0.0
  %737 = vmatpush1.msra.mxu0 0.0
  %738 = vmatprep.subr.mxu0 0.0
  %739 = vmatpush1.msra.mxu0 0.0
  %740 = vmatprep.subr.mxu0 0.0
  %741 = vmatpush1.msra.mxu0 0.0
  %742 = vmatprep.subr.mxu0 0.0
  %743 = vmatpush1.msra.mxu0 %v15
  %744 = vmatprep.subr.mxu0 0.0
  %745 = vmatpush1.msra.mxu0 %v14
  %746 = vmatprep.subr.mxu0 0.0
  %747 = vmatpush1.msra.mxu0 %v13
  %748 = vmatprep.subr.mxu0 0.0
  %749 = vmatpush1.msra.mxu0 %v12
  %750 = vmatprep.subr.mxu0 0.0
  %751 = vmatpush2.msra.mxu0 0.0
  %752 = vmatprep.subr.mxu0 0.0
  %753 = vmatpush2.msra.mxu0 0.0
  %754 = vmatprep.subr.mxu0 0.0
  %755 = vmatpush2.msra.mxu0 0.0
  %756 = vmatprep.subr.mxu0 0.0
  %757 = vmatpush2.msra.mxu0 0.0
  %758 = vmatprep.subr.mxu0 0.0
  %759 = vmatpush2.msra.mxu0 0.0
  %760 = vmatprep.subr.mxu0 0.0
  %761 = vmatpush2.msra.mxu0 0.0
  %762 = vmatprep.subr.mxu0 0.0
  %763 = vmatpush2.msra.mxu0 0.0
  %764 = vmatprep.subr.mxu0 0.0
  %765 = vmatpush2.msra.mxu0 0.0
  %766 = vmatprep.subr.mxu0 0.0
  %767 = vmatpush2.msra.mxu0 0.0
  %768 = vmatprep.subr.mxu0 0.0
  %769 = vmatpush2.msra.mxu0 0.0
  %770 = vmatprep.subr.mxu0 0.0
  %771 = vmatpush2.msra.mxu0 0.0
  %772 = vmatprep.subr.mxu0 0.0
  %773 = vmatpush2.msra.mxu0 0.0
  %774 = vmatprep.subr.mxu0 0.0
  %775 = vmatpush2.msra.mxu0 0.0
  %776 = vmatprep.subr.mxu0 0.0
  %777 = vmatpush2.msra.mxu0 0.0
  %778 = vmatprep.subr.mxu0 0.0
  %779 = vmatpush2.msra.mxu0 0.0
  %780 = vmatprep.subr.mxu0 0.0
  %781 = vmatpush2.msra.mxu0 0.0
  %782 = vmatprep.mubr.f32.mxu0 0.0
  %783 = vmatmul.mubr.f32.gmra.mxu0 %v621
  %v784 = vpop.f32.mrf.mxu0
  %v785 = vadd.f32 0.0, %v784
  %v786 = vpop.f32.mrf.mxu0
  %787 = vdwg.mxu0
  %v788 = vadd.f32 %v151, %v785
  %v789 = vxor.u32 %v788, 2147483648
  %v790 = vmul.f32 %v789, 1.442695
  %v791 = vpow.pop %v790
  %v792 = vadd.f32 %v791, 1.0
  %v793 = vrcp.pop %v792
  %v794 = vmul.f32 1.0, %v793
  %v795 = vtanh.pop %v788
  %v796 = vmul.f32 %v794, %v536
  %798 = vrot.lane.b32.xlu0 %v795, 64
  %v799 = vpop.permute.xlu0 %798
  %v801 = vmul.f32 %v794, %v799
  %803 = vrot.lane.b32.xlu0 %v801, 32
  %v804 = vpop.permute.xlu0 %803
  %v806 = vadd.f32 %v796, %v804
  %v807 = vtanh.pop %v806
  %809 = vrot.lane.b32.xlu0 %v807, 64
  %v810 = vpop.permute.xlu0 %809
  %v812 = vmul.f32 %v794, %v810
  %814 = vrot.lane.b32.xlu0 %v717, 32
  %v815 = vpop.permute.xlu0 %814
  %v816 = vsel %vm179, %v815, 0
  %818 = vmatprep.subr.mxu0 0.0
  %819 = vmatpush1.msra.mxu0 0.0
  %820 = vmatprep.subr.mxu0 0.0
  %821 = vmatpush1.msra.mxu0 0.0
  %822 = vmatprep.subr.mxu0 0.0
  %823 = vmatpush1.msra.mxu0 0.0
  %824 = vmatprep.subr.mxu0 0.0
  %825 = vmatpush1.msra.mxu0 0.0
  %826 = vmatprep.subr.mxu0 0.0
  %827 = vmatpush1.msra.mxu0 0.0
  %828 = vmatprep.subr.mxu0 0.0
  %829 = vmatpush1.msra.mxu0 0.0
  %830 = vmatprep.subr.mxu0 0.0
  %831 = vmatpush1.msra.mxu0 0.0
  %832 = vmatprep.subr.mxu0 0.0
  %833 = vmatpush1.msra.mxu0 0.0
  %834 = vmatprep.subr.mxu0 0.0
  %835 = vmatpush1.msra.mxu0 0.0
  %836 = vmatprep.subr.mxu0 0.0
  %837 = vmatpush1.msra.mxu0 0.0
  %838 = vmatprep.subr.mxu0 0.0
  %839 = vmatpush1.msra.mxu0 0.0
  %840 = vmatprep.subr.mxu0 0.0
  %841 = vmatpush1.msra.mxu0 0.0
  %842 = vmatprep.subr.mxu0 0.0
  %843 = vmatpush1.msra.mxu0 %v23
  %844 = vmatprep.subr.mxu0 0.0
  %845 = vmatpush1.msra.mxu0 %v22
  %846 = vmatprep.subr.mxu0 0.0
  %847 = vmatpush1.msra.mxu0 %v21
  %848 = vmatprep.subr.mxu0 0.0
  %849 = vmatpush1.msra.mxu0 %v20
  %850 = vmatprep.subr.mxu0 0.0
  %851 = vmatpush2.msra.mxu0 0.0
  %852 = vmatprep.subr.mxu0 0.0
  %853 = vmatpush2.msra.mxu0 0.0
  %854 = vmatprep.subr.mxu0 0.0
  %855 = vmatpush2.msra.mxu0 0.0
  %856 = vmatprep.subr.mxu0 0.0
  %857 = vmatpush2.msra.mxu0 0.0
  %858 = vmatprep.subr.mxu0 0.0
  %859 = vmatpush2.msra.mxu0 0.0
  %860 = vmatprep.subr.mxu0 0.0
  %861 = vmatpush2.msra.mxu0 0.0
  %862 = vmatprep.subr.mxu0 0.0
  %863 = vmatpush2.msra.mxu0 0.0
  %864 = vmatprep.subr.mxu0 0.0
  %865 = vmatpush2.msra.mxu0 0.0
  %866 = vmatprep.subr.mxu0 0.0
  %867 = vmatpush2.msra.mxu0 0.0
  %868 = vmatprep.subr.mxu0 0.0
  %869 = vmatpush2.msra.mxu0 0.0
  %870 = vmatprep.subr.mxu0 0.0
  %871 = vmatpush2.msra.mxu0 0.0
  %872 = vmatprep.subr.mxu0 0.0
  %873 = vmatpush2.msra.mxu0 0.0
  %874 = vmatprep.subr.mxu0 0.0
  %875 = vmatpush2.msra.mxu0 0.0
  %876 = vmatprep.subr.mxu0 0.0
  %877 = vmatpush2.msra.mxu0 0.0
  %878 = vmatprep.subr.mxu0 0.0
  %879 = vmatpush2.msra.mxu0 0.0
  %880 = vmatprep.subr.mxu0 0.0
  %881 = vmatpush2.msra.mxu0 0.0
  %882 = vmatprep.mubr.f32.mxu0 0.0
  %883 = vmatmul.mubr.f32.gmra.mxu0 %v816
  %v884 = vpop.f32.mrf.mxu0
  %v885 = vadd.f32 0.0, %v884
  %v886 = vpop.f32.mrf.mxu0
  %887 = vdwg.mxu0
  %889 = vrot.lane.b32.xlu0 %v812, 32
  %v890 = vpop.permute.xlu0 %889
  %v891 = vsel %vm179, %v890, 0
  %893 = vmatprep.subr.mxu0 0.0
  %894 = vmatpush1.msra.mxu0 0.0
  %895 = vmatprep.subr.mxu0 0.0
  %896 = vmatpush1.msra.mxu0 0.0
  %897 = vmatprep.subr.mxu0 0.0
  %898 = vmatpush1.msra.mxu0 0.0
  %899 = vmatprep.subr.mxu0 0.0
  %900 = vmatpush1.msra.mxu0 0.0
  %901 = vmatprep.subr.mxu0 0.0
  %902 = vmatpush1.msra.mxu0 0.0
  %903 = vmatprep.subr.mxu0 0.0
  %904 = vmatpush1.msra.mxu0 0.0
  %905 = vmatprep.subr.mxu0 0.0
  %906 = vmatpush1.msra.mxu0 0.0
  %907 = vmatprep.subr.mxu0 0.0
  %908 = vmatpush1.msra.mxu0 0.0
  %909 = vmatprep.subr.mxu0 0.0
  %910 = vmatpush1.msra.mxu0 0.0
  %911 = vmatprep.subr.mxu0 0.0
  %912 = vmatpush1.msra.mxu0 0.0
  %913 = vmatprep.subr.mxu0 0.0
  %914 = vmatpush1.msra.mxu0 0.0
  %915 = vmatprep.subr.mxu0 0.0
  %916 = vmatpush1.msra.mxu0 0.0
  %917 = vmatprep.subr.mxu0 0.0
  %918 = vmatpush1.msra.mxu0 %v19
  %919 = vmatprep.subr.mxu0 0.0
  %920 = vmatpush1.msra.mxu0 %v18
  %921 = vmatprep.subr.mxu0 0.0
  %922 = vmatpush1.msra.mxu0 %v17
  %923 = vmatprep.subr.mxu0 0.0
  %924 = vmatpush1.msra.mxu0 %v16
  %925 = vmatprep.subr.mxu0 0.0
  %926 = vmatpush2.msra.mxu0 0.0
  %927 = vmatprep.subr.mxu0 0.0
  %928 = vmatpush2.msra.mxu0 0.0
  %929 = vmatprep.subr.mxu0 0.0
  %930 = vmatpush2.msra.mxu0 0.0
  %931 = vmatprep.subr.mxu0 0.0
  %932 = vmatpush2.msra.mxu0 0.0
  %933 = vmatprep.subr.mxu0 0.0
  %934 = vmatpush2.msra.mxu0 0.0
  %935 = vmatprep.subr.mxu0 0.0
  %936 = vmatpush2.msra.mxu0 0.0
  %937 = vmatprep.subr.mxu0 0.0
  %938 = vmatpush2.msra.mxu0 0.0
  %939 = vmatprep.subr.mxu0 0.0
  %940 = vmatpush2.msra.mxu0 0.0
  %941 = vmatprep.subr.mxu0 0.0
  %942 = vmatpush2.msra.mxu0 0.0
  %943 = vmatprep.subr.mxu0 0.0
  %944 = vmatpush2.msra.mxu0 0.0
  %945 = vmatprep.subr.mxu0 0.0
  %946 = vmatpush2.msra.mxu0 0.0
  %947 = vmatprep.subr.mxu0 0.0
  %948 = vmatpush2.msra.mxu0 0.0
  %949 = vmatprep.subr.mxu0 0.0
  %950 = vmatpush2.msra.mxu0 0.0
  %951 = vmatprep.subr.mxu0 0.0
  %952 = vmatpush2.msra.mxu0 0.0
  %953 = vmatprep.subr.mxu0 0.0
  %954 = vmatpush2.msra.mxu0 0.0
  %955 = vmatprep.subr.mxu0 0.0
  %956 = vmatpush2.msra.mxu0 0.0
  %957 = vmatprep.mubr.f32.mxu0 0.0
  %958 = vmatmul.mubr.f32.gmra.mxu0 %v891
  %v959 = vpop.f32.mrf.mxu0
  %v960 = vadd.f32 %v885, %v959
  %v961 = vpop.f32.mrf.mxu0
  %962 = vdwg.mxu0
  %v963 = vadd.f32 %v960, %v32
  %v964 = vxor.u32 %v963, 2147483648
  %v965 = vmul.f32 %v964, 1.442695
  %v966 = vpow.pop %v965
  %v967 = vadd.f32 %v966, 1.0
  %v968 = vrcp.pop %v967
  %v969 = vmul.f32 1.0, %v968
  %v970 = vtanh.pop %v963
  %v971 = vmul.f32 %v969, %v711
  %973 = vrot.lane.b32.xlu0 %v970, 64
  %v974 = vpop.permute.xlu0 %973
  %v976 = vmul.f32 %v969, %v974
  %978 = vrot.lane.b32.xlu0 %v976, 32
  %v979 = vpop.permute.xlu0 %978
  %v981 = vadd.f32 %v971, %v979
  %v982 = vtanh.pop %v981
  %984 = vrot.lane.b32.xlu0 %v982, 64
  %v985 = vpop.permute.xlu0 %984
  %v987 = vmul.f32 %v969, %v985
  %988 = vmatprep.subr.mxu0 0.0
  %989 = vmatpush1.msra.mxu0 0.0
  %990 = vmatprep.subr.mxu0 0.0
  %991 = vmatpush1.msra.mxu0 0.0
  %992 = vmatprep.subr.mxu0 0.0
  %993 = vmatpush1.msra.mxu0 0.0
  %994 = vmatprep.subr.mxu0 0.0
  %995 = vmatpush1.msra.mxu0 0.0
  %996 = vmatprep.subr.mxu0 0.0
  %997 = vmatpush1.msra.mxu0 0.0
  %998 = vmatprep.subr.mxu0 0.0
  %999 = vmatpush1.msra.mxu0 0.0
  %1000 = vmatprep.subr.mxu0 0.0
  %1001 = vmatpush1.msra.mxu0 0.0
  %1002 = vmatprep.subr.mxu0 0.0
  %1003 = vmatpush1.msra.mxu0 0.0
  %1004 = vmatprep.subr.mxu0 0.0
  %1005 = vmatpush1.msra.mxu0 0.0
  %1006 = vmatprep.subr.mxu0 0.0
  %1007 = vmatpush1.msra.mxu0 0.0
  %1008 = vmatprep.subr.mxu0 0.0
  %1009 = vmatpush1.msra.mxu0 0.0
  %1010 = vmatprep.subr.mxu0 0.0
  %1011 = vmatpush1.msra.mxu0 0.0
  %1012 = vmatprep.subr.mxu0 0.0
  %1013 = vmatpush1.msra.mxu0 %v15
  %1014 = vmatprep.subr.mxu0 0.0
  %1015 = vmatpush1.msra.mxu0 %v14
  %1016 = vmatprep.subr.mxu0 0.0
  %1017 = vmatpush1.msra.mxu0 %v13
  %1018 = vmatprep.subr.mxu0 0.0
  %1019 = vmatpush1.msra.mxu0 %v12
  %1020 = vmatprep.subr.mxu0 0.0
  %1021 = vmatpush2.msra.mxu0 0.0
  %1022 = vmatprep.subr.mxu0 0.0
  %1023 = vmatpush2.msra.mxu0 0.0
  %1024 = vmatprep.subr.mxu0 0.0
  %1025 = vmatpush2.msra.mxu0 0.0
  %1026 = vmatprep.subr.mxu0 0.0
  %1027 = vmatpush2.msra.mxu0 0.0
  %1028 = vmatprep.subr.mxu0 0.0
  %1029 = vmatpush2.msra.mxu0 0.0
  %1030 = vmatprep.subr.mxu0 0.0
  %1031 = vmatpush2.msra.mxu0 0.0
  %1032 = vmatprep.subr.mxu0 0.0
  %1033 = vmatpush2.msra.mxu0 0.0
  %1034 = vmatprep.subr.mxu0 0.0
  %1035 = vmatpush2.msra.mxu0 0.0
  %1036 = vmatprep.subr.mxu0 0.0
  %1037 = vmatpush2.msra.mxu0 0.0
  %1038 = vmatprep.subr.mxu0 0.0
  %1039 = vmatpush2.msra.mxu0 0.0
  %1040 = vmatprep.subr.mxu0 0.0
  %1041 = vmatpush2.msra.mxu0 0.0
  %1042 = vmatprep.subr.mxu0 0.0
  %1043 = vmatpush2.msra.mxu0 0.0
  %1044 = vmatprep.subr.mxu0 0.0
  %1045 = vmatpush2.msra.mxu0 0.0
  %1046 = vmatprep.subr.mxu0 0.0
  %1047 = vmatpush2.msra.mxu0 0.0
  %1048 = vmatprep.subr.mxu0 0.0
  %1049 = vmatpush2.msra.mxu0 0.0
  %1050 = vmatprep.subr.mxu0 0.0
  %1051 = vmatpush2.msra.mxu0 0.0
  %1052 = vmatprep.mubr.f32.mxu0 0.0
  %1053 = vmatmul.mubr.f32.gmra.mxu0 %v891
  %v1054 = vpop.f32.mrf.mxu0
  %v1055 = vadd.f32 0.0, %v1054
  %v1056 = vpop.f32.mrf.mxu0
  %1057 = vdwg.mxu0
  %v1058 = vadd.f32 %v156, %v1055
  %v1059 = vxor.u32 %v1058, 2147483648
  %v1060 = vmul.f32 %v1059, 1.442695
  %v1061 = vpow.pop %v1060
  %v1062 = vadd.f32 %v1061, 1.0
  %v1063 = vrcp.pop %v1062
  %v1064 = vmul.f32 1.0, %v1063
  %v1065 = vtanh.pop %v1058
  %v1066 = vmul.f32 %v1064, %v806
  %1068 = vrot.lane.b32.xlu0 %v1065, 64
  %v1069 = vpop.permute.xlu0 %1068
  %v1071 = vmul.f32 %v1064, %v1069
  %1073 = vrot.lane.b32.xlu0 %v1071, 32
  %v1074 = vpop.permute.xlu0 %1073
  %v1076 = vadd.f32 %v1066, %v1074
  %v1077 = vtanh.pop %v1076
  %1079 = vrot.lane.b32.xlu0 %v1077, 64
  %v1080 = vpop.permute.xlu0 %1079
  %v1082 = vmul.f32 %v1064, %v1080
  %1084 = vrot.lane.b32.xlu0 %v987, 32
  %v1085 = vpop.permute.xlu0 %1084
  %v1086 = vsel %vm179, %v1085, 0
  %1088 = vmatprep.subr.mxu0 0.0
  %1089 = vmatpush1.msra.mxu0 0.0
  %1090 = vmatprep.subr.mxu0 0.0
  %1091 = vmatpush1.msra.mxu0 0.0
  %1092 = vmatprep.subr.mxu0 0.0
  %1093 = vmatpush1.msra.mxu0 0.0
  %1094 = vmatprep.subr.mxu0 0.0
  %1095 = vmatpush1.msra.mxu0 0.0
  %1096 = vmatprep.subr.mxu0 0.0
  %1097 = vmatpush1.msra.mxu0 0.0
  %1098 = vmatprep.subr.mxu0 0.0
  %1099 = vmatpush1.msra.mxu0 0.0
  %1100 = vmatprep.subr.mxu0 0.0
  %1101 = vmatpush1.msra.mxu0 0.0
  %1102 = vmatprep.subr.mxu0 0.0
  %1103 = vmatpush1.msra.mxu0 0.0
  %1104 = vmatprep.subr.mxu0 0.0
  %1105 = vmatpush1.msra.mxu0 0.0
  %1106 = vmatprep.subr.mxu0 0.0
  %1107 = vmatpush1.msra.mxu0 0.0
  %1108 = vmatprep.subr.mxu0 0.0
  %1109 = vmatpush1.msra.mxu0 0.0
  %1110 = vmatprep.subr.mxu0 0.0
  %1111 = vmatpush1.msra.mxu0 0.0
  %1112 = vmatprep.subr.mxu0 0.0
  %1113 = vmatpush1.msra.mxu0 %v23
  %1114 = vmatprep.subr.mxu0 0.0
  %1115 = vmatpush1.msra.mxu0 %v22
  %1116 = vmatprep.subr.mxu0 0.0
  %1117 = vmatpush1.msra.mxu0 %v21
  %1118 = vmatprep.subr.mxu0 0.0
  %1119 = vmatpush1.msra.mxu0 %v20
  %1120 = vmatprep.subr.mxu0 0.0
  %1121 = vmatpush2.msra.mxu0 0.0
  %1122 = vmatprep.subr.mxu0 0.0
  %1123 = vmatpush2.msra.mxu0 0.0
  %1124 = vmatprep.subr.mxu0 0.0
  %1125 = vmatpush2.msra.mxu0 0.0
  %1126 = vmatprep.subr.mxu0 0.0
  %1127 = vmatpush2.msra.mxu0 0.0
  %1128 = vmatprep.subr.mxu0 0.0
  %1129 = vmatpush2.msra.mxu0 0.0
  %1130 = vmatprep.subr.mxu0 0.0
  %1131 = vmatpush2.msra.mxu0 0.0
  %1132 = vmatprep.subr.mxu0 0.0
  %1133 = vmatpush2.msra.mxu0 0.0
  %1134 = vmatprep.subr.mxu0 0.0
  %1135 = vmatpush2.msra.mxu0 0.0
  %1136 = vmatprep.subr.mxu0 0.0
  %1137 = vmatpush2.msra.mxu0 0.0
  %1138 = vmatprep.subr.mxu0 0.0
  %1139 = vmatpush2.msra.mxu0 0.0
  %1140 = vmatprep.subr.mxu0 0.0
  %1141 = vmatpush2.msra.mxu0 0.0
  %1142 = vmatprep.subr.mxu0 0.0
  %1143 = vmatpush2.msra.mxu0 0.0
  %1144 = vmatprep.subr.mxu0 0.0
  %1145 = vmatpush2.msra.mxu0 0.0
  %1146 = vmatprep.subr.mxu0 0.0
  %1147 = vmatpush2.msra.mxu0 0.0
  %1148 = vmatprep.subr.mxu0 0.0
  %1149 = vmatpush2.msra.mxu0 0.0
  %1150 = vmatprep.subr.mxu0 0.0
  %1151 = vmatpush2.msra.mxu0 0.0
  %1152 = vmatprep.mubr.f32.mxu0 0.0
  %1153 = vmatmul.mubr.f32.gmra.mxu0 %v1086
  %v1154 = vpop.f32.mrf.mxu0
  %v1155 = vadd.f32 0.0, %v1154
  %v1156 = vpop.f32.mrf.mxu0
  %1157 = vdwg.mxu0
  %1159 = vrot.lane.b32.xlu0 %v1082, 32
  %v1160 = vpop.permute.xlu0 %1159
  %v1161 = vsel %vm179, %v1160, 0
  %1163 = vmatprep.subr.mxu0 0.0
  %1164 = vmatpush1.msra.mxu0 0.0
  %1165 = vmatprep.subr.mxu0 0.0
  %1166 = vmatpush1.msra.mxu0 0.0
  %1167 = vmatprep.subr.mxu0 0.0
  %1168 = vmatpush1.msra.mxu0 0.0
  %1169 = vmatprep.subr.mxu0 0.0
  %1170 = vmatpush1.msra.mxu0 0.0
  %1171 = vmatprep.subr.mxu0 0.0
  %1172 = vmatpush1.msra.mxu0 0.0
  %1173 = vmatprep.subr.mxu0 0.0
  %1174 = vmatpush1.msra.mxu0 0.0
  %1175 = vmatprep.subr.mxu0 0.0
  %1176 = vmatpush1.msra.mxu0 0.0
  %1177 = vmatprep.subr.mxu0 0.0
  %1178 = vmatpush1.msra.mxu0 0.0
  %1179 = vmatprep.subr.mxu0 0.0
  %1180 = vmatpush1.msra.mxu0 0.0
  %1181 = vmatprep.subr.mxu0 0.0
  %1182 = vmatpush1.msra.mxu0 0.0
  %1183 = vmatprep.subr.mxu0 0.0
  %1184 = vmatpush1.msra.mxu0 0.0
  %1185 = vmatprep.subr.mxu0 0.0
  %1186 = vmatpush1.msra.mxu0 0.0
  %1187 = vmatprep.subr.mxu0 0.0
  %1188 = vmatpush1.msra.mxu0 %v19
  %1189 = vmatprep.subr.mxu0 0.0
  %1190 = vmatpush1.msra.mxu0 %v18
  %1191 = vmatprep.subr.mxu0 0.0
  %1192 = vmatpush1.msra.mxu0 %v17
  %1193 = vmatprep.subr.mxu0 0.0
  %1194 = vmatpush1.msra.mxu0 %v16
  %1195 = vmatprep.subr.mxu0 0.0
  %1196 = vmatpush2.msra.mxu0 0.0
  %1197 = vmatprep.subr.mxu0 0.0
  %1198 = vmatpush2.msra.mxu0 0.0
  %1199 = vmatprep.subr.mxu0 0.0
  %1200 = vmatpush2.msra.mxu0 0.0
  %1201 = vmatprep.subr.mxu0 0.0
  %1202 = vmatpush2.msra.mxu0 0.0
  %1203 = vmatprep.subr.mxu0 0.0
  %1204 = vmatpush2.msra.mxu0 0.0
  %1205 = vmatprep.subr.mxu0 0.0
  %1206 = vmatpush2.msra.mxu0 0.0
  %1207 = vmatprep.subr.mxu0 0.0
  %1208 = vmatpush2.msra.mxu0 0.0
  %1209 = vmatprep.subr.mxu0 0.0
  %1210 = vmatpush2.msra.mxu0 0.0
  %1211 = vmatprep.subr.mxu0 0.0
  %1212 = vmatpush2.msra.mxu0 0.0
  %1213 = vmatprep.subr.mxu0 0.0
  %1214 = vmatpush2.msra.mxu0 0.0
  %1215 = vmatprep.subr.mxu0 0.0
  %1216 = vmatpush2.msra.mxu0 0.0
  %1217 = vmatprep.subr.mxu0 0.0
  %1218 = vmatpush2.msra.mxu0 0.0
  %1219 = vmatprep.subr.mxu0 0.0
  %1220 = vmatpush2.msra.mxu0 0.0
  %1221 = vmatprep.subr.mxu0 0.0
  %1222 = vmatpush2.msra.mxu0 0.0
  %1223 = vmatprep.subr.mxu0 0.0
  %1224 = vmatpush2.msra.mxu0 0.0
  %1225 = vmatprep.subr.mxu0 0.0
  %1226 = vmatpush2.msra.mxu0 0.0
  %1227 = vmatprep.mubr.f32.mxu0 0.0
  %1228 = vmatmul.mubr.f32.gmra.mxu0 %v1161
  %v1229 = vpop.f32.mrf.mxu0
  %v1230 = vadd.f32 %v1155, %v1229
  %v1231 = vpop.f32.mrf.mxu0
  %1232 = vdwg.mxu0
  %v1233 = vadd.f32 %v1230, %v32
  %v1234 = vxor.u32 %v1233, 2147483648
  %v1235 = vmul.f32 %v1234, 1.442695
  %v1236 = vpow.pop %v1235
  %v1237 = vadd.f32 %v1236, 1.0
  %v1238 = vrcp.pop %v1237
  %v1239 = vmul.f32 1.0, %v1238
  %v1240 = vtanh.pop %v1233
  %v1241 = vmul.f32 %v1239, %v981
  %1243 = vrot.lane.b32.xlu0 %v1240, 64
  %v1244 = vpop.permute.xlu0 %1243
  %v1246 = vmul.f32 %v1239, %v1244
  %1248 = vrot.lane.b32.xlu0 %v1246, 32
  %v1249 = vpop.permute.xlu0 %1248
  %v1251 = vadd.f32 %v1241, %v1249
  %v1252 = vtanh.pop %v1251
  %1254 = vrot.lane.b32.xlu0 %v1252, 64
  %v1255 = vpop.permute.xlu0 %1254
  %v1257 = vmul.f32 %v1239, %v1255
  %1258 = vmatprep.subr.mxu0 0.0
  %1259 = vmatpush1.msra.mxu0 0.0
  %1260 = vmatprep.subr.mxu0 0.0
  %1261 = vmatpush1.msra.mxu0 0.0
  %1262 = vmatprep.subr.mxu0 0.0
  %1263 = vmatpush1.msra.mxu0 0.0
  %1264 = vmatprep.subr.mxu0 0.0
  %1265 = vmatpush1.msra.mxu0 0.0
  %1266 = vmatprep.subr.mxu0 0.0
  %1267 = vmatpush1.msra.mxu0 0.0
  %1268 = vmatprep.subr.mxu0 0.0
  %1269 = vmatpush1.msra.mxu0 0.0
  %1270 = vmatprep.subr.mxu0 0.0
  %1271 = vmatpush1.msra.mxu0 0.0
  %1272 = vmatprep.subr.mxu0 0.0
  %1273 = vmatpush1.msra.mxu0 0.0
  %1274 = vmatprep.subr.mxu0 0.0
  %1275 = vmatpush1.msra.mxu0 0.0
  %1276 = vmatprep.subr.mxu0 0.0
  %1277 = vmatpush1.msra.mxu0 0.0
  %1278 = vmatprep.subr.mxu0 0.0
  %1279 = vmatpush1.msra.mxu0 0.0
  %1280 = vmatprep.subr.mxu0 0.0
  %1281 = vmatpush1.msra.mxu0 0.0
  %1282 = vmatprep.subr.mxu0 0.0
  %1283 = vmatpush1.msra.mxu0 %v15
  %1284 = vmatprep.subr.mxu0 0.0
  %1285 = vmatpush1.msra.mxu0 %v14
  %1286 = vmatprep.subr.mxu0 0.0
  %1287 = vmatpush1.msra.mxu0 %v13
  %1288 = vmatprep.subr.mxu0 0.0
  %1289 = vmatpush1.msra.mxu0 %v12
  %1290 = vmatprep.subr.mxu0 0.0
  %1291 = vmatpush2.msra.mxu0 0.0
  %1292 = vmatprep.subr.mxu0 0.0
  %1293 = vmatpush2.msra.mxu0 0.0
  %1294 = vmatprep.subr.mxu0 0.0
  %1295 = vmatpush2.msra.mxu0 0.0
  %1296 = vmatprep.subr.mxu0 0.0
  %1297 = vmatpush2.msra.mxu0 0.0
  %1298 = vmatprep.subr.mxu0 0.0
  %1299 = vmatpush2.msra.mxu0 0.0
  %1300 = vmatprep.subr.mxu0 0.0
  %1301 = vmatpush2.msra.mxu0 0.0
  %1302 = vmatprep.subr.mxu0 0.0
  %1303 = vmatpush2.msra.mxu0 0.0
  %1304 = vmatprep.subr.mxu0 0.0
  %1305 = vmatpush2.msra.mxu0 0.0
  %1306 = vmatprep.subr.mxu0 0.0
  %1307 = vmatpush2.msra.mxu0 0.0
  %1308 = vmatprep.subr.mxu0 0.0
  %1309 = vmatpush2.msra.mxu0 0.0
  %1310 = vmatprep.subr.mxu0 0.0
  %1311 = vmatpush2.msra.mxu0 0.0
  %1312 = vmatprep.subr.mxu0 0.0
  %1313 = vmatpush2.msra.mxu0 0.0
  %1314 = vmatprep.subr.mxu0 0.0
  %1315 = vmatpush2.msra.mxu0 0.0
  %1316 = vmatprep.subr.mxu0 0.0
  %1317 = vmatpush2.msra.mxu0 0.0
  %1318 = vmatprep.subr.mxu0 0.0
  %1319 = vmatpush2.msra.mxu0 0.0
  %1320 = vmatprep.subr.mxu0 0.0
  %1321 = vmatpush2.msra.mxu0 0.0
  %1322 = vmatprep.mubr.f32.mxu0 0.0
  %1323 = vmatmul.mubr.f32.gmra.mxu0 %v1161
  %v1324 = vpop.f32.mrf.mxu0
  %v1325 = vadd.f32 0.0, %v1324
  %v1326 = vpop.f32.mrf.mxu0
  %1327 = vdwg.mxu0
  %v1328 = vadd.f32 %v161, %v1325
  %v1329 = vxor.u32 %v1328, 2147483648
  %v1330 = vmul.f32 %v1329, 1.442695
  %v1331 = vpow.pop %v1330
  %v1332 = vadd.f32 %v1331, 1.0
  %v1333 = vrcp.pop %v1332
  %v1334 = vmul.f32 1.0, %v1333
  %v1335 = vtanh.pop %v1328
  %v1336 = vmul.f32 %v1334, %v1076
  %1338 = vrot.lane.b32.xlu0 %v1335, 64
  %v1339 = vpop.permute.xlu0 %1338
  %v1341 = vmul.f32 %v1334, %v1339
  %1343 = vrot.lane.b32.xlu0 %v1341, 32
  %v1344 = vpop.permute.xlu0 %1343
  %v1346 = vadd.f32 %v1336, %v1344
  %v1347 = vtanh.pop %v1346
  %1349 = vrot.lane.b32.xlu0 %v1347, 64
  %v1350 = vpop.permute.xlu0 %1349
  %v1352 = vmul.f32 %v1334, %v1350
  %1354 = vrot.lane.b32.xlu0 %v1257, 32
  %v1355 = vpop.permute.xlu0 %1354
  %v1356 = vsel %vm179, %v1355, 0
  %1358 = vmatprep.subr.mxu0 0.0
  %1359 = vmatpush1.msra.mxu0 0.0
  %1360 = vmatprep.subr.mxu0 0.0
  %1361 = vmatpush1.msra.mxu0 0.0
  %1362 = vmatprep.subr.mxu0 0.0
  %1363 = vmatpush1.msra.mxu0 0.0
  %1364 = vmatprep.subr.mxu0 0.0
  %1365 = vmatpush1.msra.mxu0 0.0
  %1366 = vmatprep.subr.mxu0 0.0
  %1367 = vmatpush1.msra.mxu0 0.0
  %1368 = vmatprep.subr.mxu0 0.0
  %1369 = vmatpush1.msra.mxu0 0.0
  %1370 = vmatprep.subr.mxu0 0.0
  %1371 = vmatpush1.msra.mxu0 0.0
  %1372 = vmatprep.subr.mxu0 0.0
  %1373 = vmatpush1.msra.mxu0 0.0
  %1374 = vmatprep.subr.mxu0 0.0
  %1375 = vmatpush1.msra.mxu0 0.0
  %1376 = vmatprep.subr.mxu0 0.0
  %1377 = vmatpush1.msra.mxu0 0.0
  %1378 = vmatprep.subr.mxu0 0.0
  %1379 = vmatpush1.msra.mxu0 0.0
  %1380 = vmatprep.subr.mxu0 0.0
  %1381 = vmatpush1.msra.mxu0 0.0
  %1382 = vmatprep.subr.mxu0 0.0
  %1383 = vmatpush1.msra.mxu0 %v23
  %1384 = vmatprep.subr.mxu0 0.0
  %1385 = vmatpush1.msra.mxu0 %v22
  %1386 = vmatprep.subr.mxu0 0.0
  %1387 = vmatpush1.msra.mxu0 %v21
  %1388 = vmatprep.subr.mxu0 0.0
  %1389 = vmatpush1.msra.mxu0 %v20
  %1390 = vmatprep.subr.mxu0 0.0
  %1391 = vmatpush2.msra.mxu0 0.0
  %1392 = vmatprep.subr.mxu0 0.0
  %1393 = vmatpush2.msra.mxu0 0.0
  %1394 = vmatprep.subr.mxu0 0.0
  %1395 = vmatpush2.msra.mxu0 0.0
  %1396 = vmatprep.subr.mxu0 0.0
  %1397 = vmatpush2.msra.mxu0 0.0
  %1398 = vmatprep.subr.mxu0 0.0
  %1399 = vmatpush2.msra.mxu0 0.0
  %1400 = vmatprep.subr.mxu0 0.0
  %1401 = vmatpush2.msra.mxu0 0.0
  %1402 = vmatprep.subr.mxu0 0.0
  %1403 = vmatpush2.msra.mxu0 0.0
  %1404 = vmatprep.subr.mxu0 0.0
  %1405 = vmatpush2.msra.mxu0 0.0
  %1406 = vmatprep.subr.mxu0 0.0
  %1407 = vmatpush2.msra.mxu0 0.0
  %1408 = vmatprep.subr.mxu0 0.0
  %1409 = vmatpush2.msra.mxu0 0.0
  %1410 = vmatprep.subr.mxu0 0.0
  %1411 = vmatpush2.msra.mxu0 0.0
  %1412 = vmatprep.subr.mxu0 0.0
  %1413 = vmatpush2.msra.mxu0 0.0
  %1414 = vmatprep.subr.mxu0 0.0
  %1415 = vmatpush2.msra.mxu0 0.0
  %1416 = vmatprep.subr.mxu0 0.0
  %1417 = vmatpush2.msra.mxu0 0.0
  %1418 = vmatprep.subr.mxu0 0.0
  %1419 = vmatpush2.msra.mxu0 0.0
  %1420 = vmatprep.subr.mxu0 0.0
  %1421 = vmatpush2.msra.mxu0 0.0
  %1422 = vmatprep.mubr.f32.mxu0 0.0
  %1423 = vmatmul.mubr.f32.gmra.mxu0 %v1356
  %v1424 = vpop.f32.mrf.mxu0
  %v1425 = vadd.f32 0.0, %v1424
  %v1426 = vpop.f32.mrf.mxu0
  %1427 = vdwg.mxu0
  %1429 = vrot.lane.b32.xlu0 %v1352, 32
  %v1430 = vpop.permute.xlu0 %1429
  %v1431 = vsel %vm179, %v1430, 0
  %1433 = vmatprep.subr.mxu0 0.0
  %1434 = vmatpush1.msra.mxu0 0.0
  %1435 = vmatprep.subr.mxu0 0.0
  %1436 = vmatpush1.msra.mxu0 0.0
  %1437 = vmatprep.subr.mxu0 0.0
  %1438 = vmatpush1.msra.mxu0 0.0
  %1439 = vmatprep.subr.mxu0 0.0
  %1440 = vmatpush1.msra.mxu0 0.0
  %1441 = vmatprep.subr.mxu0 0.0
  %1442 = vmatpush1.msra.mxu0 0.0
  %1443 = vmatprep.subr.mxu0 0.0
  %1444 = vmatpush1.msra.mxu0 0.0
  %1445 = vmatprep.subr.mxu0 0.0
  %1446 = vmatpush1.msra.mxu0 0.0
  %1447 = vmatprep.subr.mxu0 0.0
  %1448 = vmatpush1.msra.mxu0 0.0
  %1449 = vmatprep.subr.mxu0 0.0
  %1450 = vmatpush1.msra.mxu0 0.0
  %1451 = vmatprep.subr.mxu0 0.0
  %1452 = vmatpush1.msra.mxu0 0.0
  %1453 = vmatprep.subr.mxu0 0.0
  %1454 = vmatpush1.msra.mxu0 0.0
  %1455 = vmatprep.subr.mxu0 0.0
  %1456 = vmatpush1.msra.mxu0 0.0
  %1457 = vmatprep.subr.mxu0 0.0
  %1458 = vmatpush1.msra.mxu0 %v19
  %1459 = vmatprep.subr.mxu0 0.0
  %1460 = vmatpush1.msra.mxu0 %v18
  %1461 = vmatprep.subr.mxu0 0.0
  %1462 = vmatpush1.msra.mxu0 %v17
  %1463 = vmatprep.subr.mxu0 0.0
  %1464 = vmatpush1.msra.mxu0 %v16
  %1465 = vmatprep.subr.mxu0 0.0
  %1466 = vmatpush2.msra.mxu0 0.0
  %1467 = vmatprep.subr.mxu0 0.0
  %1468 = vmatpush2.msra.mxu0 0.0
  %1469 = vmatprep.subr.mxu0 0.0
  %1470 = vmatpush2.msra.mxu0 0.0
  %1471 = vmatprep.subr.mxu0 0.0
  %1472 = vmatpush2.msra.mxu0 0.0
  %1473 = vmatprep.subr.mxu0 0.0
  %1474 = vmatpush2.msra.mxu0 0.0
  %1475 = vmatprep.subr.mxu0 0.0
  %1476 = vmatpush2.msra.mxu0 0.0
  %1477 = vmatprep.subr.mxu0 0.0
  %1478 = vmatpush2.msra.mxu0 0.0
  %1479 = vmatprep.subr.mxu0 0.0
  %1480 = vmatpush2.msra.mxu0 0.0
  %1481 = vmatprep.subr.mxu0 0.0
  %1482 = vmatpush2.msra.mxu0 0.0
  %1483 = vmatprep.subr.mxu0 0.0
  %1484 = vmatpush2.msra.mxu0 0.0
  %1485 = vmatprep.subr.mxu0 0.0
  %1486 = vmatpush2.msra.mxu0 0.0
  %1487 = vmatprep.subr.mxu0 0.0
  %1488 = vmatpush2.msra.mxu0 0.0
  %1489 = vmatprep.subr.mxu0 0.0
  %1490 = vmatpush2.msra.mxu0 0.0
  %1491 = vmatprep.subr.mxu0 0.0
  %1492 = vmatpush2.msra.mxu0 0.0
  %1493 = vmatprep.subr.mxu0 0.0
  %1494 = vmatpush2.msra.mxu0 0.0
  %1495 = vmatprep.subr.mxu0 0.0
  %1496 = vmatpush2.msra.mxu0 0.0
  %1497 = vmatprep.mubr.f32.mxu0 0.0
  %1498 = vmatmul.mubr.f32.gmra.mxu0 %v1431
  %v1499 = vpop.f32.mrf.mxu0
  %v1500 = vadd.f32 %v1425, %v1499
  %v1501 = vpop.f32.mrf.mxu0
  %1502 = vdwg.mxu0
  %v1503 = vadd.f32 %v1500, %v32
  %v1504 = vxor.u32 %v1503, 2147483648
  %v1505 = vmul.f32 %v1504, 1.442695
  %v1506 = vpow.pop %v1505
  %v1507 = vadd.f32 %v1506, 1.0
  %v1508 = vrcp.pop %v1507
  %v1509 = vmul.f32 1.0, %v1508
  %v1510 = vtanh.pop %v1503
  %v1511 = vmul.f32 %v1509, %v1251
  %1513 = vrot.lane.b32.xlu0 %v1510, 64
  %v1514 = vpop.permute.xlu0 %1513
  %v1516 = vmul.f32 %v1509, %v1514
  %1518 = vrot.lane.b32.xlu0 %v1516, 32
  %v1519 = vpop.permute.xlu0 %1518
  %v1521 = vadd.f32 %v1511, %v1519
  %v1522 = vtanh.pop %v1521
  %1524 = vrot.lane.b32.xlu0 %v1522, 64
  %v1525 = vpop.permute.xlu0 %1524
  %v1527 = vmul.f32 %v1509, %v1525
  %1528 = vmatprep.subr.mxu0 0.0
  %1529 = vmatpush1.msra.mxu0 0.0
  %1530 = vmatprep.subr.mxu0 0.0
  %1531 = vmatpush1.msra.mxu0 0.0
  %1532 = vmatprep.subr.mxu0 0.0
  %1533 = vmatpush1.msra.mxu0 0.0
  %1534 = vmatprep.subr.mxu0 0.0
  %1535 = vmatpush1.msra.mxu0 0.0
  %1536 = vmatprep.subr.mxu0 0.0
  %1537 = vmatpush1.msra.mxu0 0.0
  %1538 = vmatprep.subr.mxu0 0.0
  %1539 = vmatpush1.msra.mxu0 0.0
  %1540 = vmatprep.subr.mxu0 0.0
  %1541 = vmatpush1.msra.mxu0 0.0
  %1542 = vmatprep.subr.mxu0 0.0
  %1543 = vmatpush1.msra.mxu0 0.0
  %1544 = vmatprep.subr.mxu0 0.0
  %1545 = vmatpush1.msra.mxu0 0.0
  %1546 = vmatprep.subr.mxu0 0.0
  %1547 = vmatpush1.msra.mxu0 0.0
  %1548 = vmatprep.subr.mxu0 0.0
  %1549 = vmatpush1.msra.mxu0 0.0
  %1550 = vmatprep.subr.mxu0 0.0
  %1551 = vmatpush1.msra.mxu0 0.0
  %1552 = vmatprep.subr.mxu0 0.0
  %1553 = vmatpush1.msra.mxu0 %v15
  %1554 = vmatprep.subr.mxu0 0.0
  %1555 = vmatpush1.msra.mxu0 %v14
  %1556 = vmatprep.subr.mxu0 0.0
  %1557 = vmatpush1.msra.mxu0 %v13
  %1558 = vmatprep.subr.mxu0 0.0
  %1559 = vmatpush1.msra.mxu0 %v12
  %1560 = vmatprep.subr.mxu0 0.0
  %1561 = vmatpush2.msra.mxu0 0.0
  %1562 = vmatprep.subr.mxu0 0.0
  %1563 = vmatpush2.msra.mxu0 0.0
  %1564 = vmatprep.subr.mxu0 0.0
  %1565 = vmatpush2.msra.mxu0 0.0
  %1566 = vmatprep.subr.mxu0 0.0
  %1567 = vmatpush2.msra.mxu0 0.0
  %1568 = vmatprep.subr.mxu0 0.0
  %1569 = vmatpush2.msra.mxu0 0.0
  %1570 = vmatprep.subr.mxu0 0.0
  %1571 = vmatpush2.msra.mxu0 0.0
  %1572 = vmatprep.subr.mxu0 0.0
  %1573 = vmatpush2.msra.mxu0 0.0
  %1574 = vmatprep.subr.mxu0 0.0
  %1575 = vmatpush2.msra.mxu0 0.0
  %1576 = vmatprep.subr.mxu0 0.0
  %1577 = vmatpush2.msra.mxu0 0.0
  %1578 = vmatprep.subr.mxu0 0.0
  %1579 = vmatpush2.msra.mxu0 0.0
  %1580 = vmatprep.subr.mxu0 0.0
  %1581 = vmatpush2.msra.mxu0 0.0
  %1582 = vmatprep.subr.mxu0 0.0
  %1583 = vmatpush2.msra.mxu0 0.0
  %1584 = vmatprep.subr.mxu0 0.0
  %1585 = vmatpush2.msra.mxu0 0.0
  %1586 = vmatprep.subr.mxu0 0.0
  %1587 = vmatpush2.msra.mxu0 0.0
  %1588 = vmatprep.subr.mxu0 0.0
  %1589 = vmatpush2.msra.mxu0 0.0
  %1590 = vmatprep.subr.mxu0 0.0
  %1591 = vmatpush2.msra.mxu0 0.0
  %1592 = vmatprep.mubr.f32.mxu0 0.0
  %1593 = vmatmul.mubr.f32.gmra.mxu0 %v1431
  %v1594 = vpop.f32.mrf.mxu0
  %v1595 = vadd.f32 0.0, %v1594
  %v1596 = vpop.f32.mrf.mxu0
  %1597 = vdwg.mxu0
  %v1598 = vadd.f32 %v166, %v1595
  %v1599 = vxor.u32 %v1598, 2147483648
  %v1600 = vmul.f32 %v1599, 1.442695
  %v1601 = vpow.pop %v1600
  %v1602 = vadd.f32 %v1601, 1.0
  %v1603 = vrcp.pop %v1602
  %v1604 = vmul.f32 1.0, %v1603
  %v1605 = vtanh.pop %v1598
  %v1606 = vmul.f32 %v1604, %v1346
  %1608 = vrot.lane.b32.xlu0 %v1605, 64
  %v1609 = vpop.permute.xlu0 %1608
  %v1611 = vmul.f32 %v1604, %v1609
  %1613 = vrot.lane.b32.xlu0 %v1611, 32
  %v1614 = vpop.permute.xlu0 %1613
  %v1616 = vadd.f32 %v1606, %v1614
  %v1617 = vtanh.pop %v1616
  %1619 = vrot.lane.b32.xlu0 %v1617, 64
  %v1620 = vpop.permute.xlu0 %1619
  %v1622 = vmul.f32 %v1604, %v1620
  %1624 = vrot.lane.b32.xlu0 %v1527, 32
  %v1625 = vpop.permute.xlu0 %1624
  %v1626 = vsel %vm179, %v1625, 0
  %1628 = vmatprep.subr.mxu0 0.0
  %1629 = vmatpush1.msra.mxu0 0.0
  %1630 = vmatprep.subr.mxu0 0.0
  %1631 = vmatpush1.msra.mxu0 0.0
  %1632 = vmatprep.subr.mxu0 0.0
  %1633 = vmatpush1.msra.mxu0 0.0
  %1634 = vmatprep.subr.mxu0 0.0
  %1635 = vmatpush1.msra.mxu0 0.0
  %1636 = vmatprep.subr.mxu0 0.0
  %1637 = vmatpush1.msra.mxu0 0.0
  %1638 = vmatprep.subr.mxu0 0.0
  %1639 = vmatpush1.msra.mxu0 0.0
  %1640 = vmatprep.subr.mxu0 0.0
  %1641 = vmatpush1.msra.mxu0 0.0
  %1642 = vmatprep.subr.mxu0 0.0
  %1643 = vmatpush1.msra.mxu0 0.0
  %1644 = vmatprep.subr.mxu0 0.0
  %1645 = vmatpush1.msra.mxu0 0.0
  %1646 = vmatprep.subr.mxu0 0.0
  %1647 = vmatpush1.msra.mxu0 0.0
  %1648 = vmatprep.subr.mxu0 0.0
  %1649 = vmatpush1.msra.mxu0 0.0
  %1650 = vmatprep.subr.mxu0 0.0
  %1651 = vmatpush1.msra.mxu0 0.0
  %1652 = vmatprep.subr.mxu0 0.0
  %1653 = vmatpush1.msra.mxu0 %v23
  %1654 = vmatprep.subr.mxu0 0.0
  %1655 = vmatpush1.msra.mxu0 %v22
  %1656 = vmatprep.subr.mxu0 0.0
  %1657 = vmatpush1.msra.mxu0 %v21
  %1658 = vmatprep.subr.mxu0 0.0
  %1659 = vmatpush1.msra.mxu0 %v20
  %1660 = vmatprep.subr.mxu0 0.0
  %1661 = vmatpush2.msra.mxu0 0.0
  %1662 = vmatprep.subr.mxu0 0.0
  %1663 = vmatpush2.msra.mxu0 0.0
  %1664 = vmatprep.subr.mxu0 0.0
  %1665 = vmatpush2.msra.mxu0 0.0
  %1666 = vmatprep.subr.mxu0 0.0
  %1667 = vmatpush2.msra.mxu0 0.0
  %1668 = vmatprep.subr.mxu0 0.0
  %1669 = vmatpush2.msra.mxu0 0.0
  %1670 = vmatprep.subr.mxu0 0.0
  %1671 = vmatpush2.msra.mxu0 0.0
  %1672 = vmatprep.subr.mxu0 0.0
  %1673 = vmatpush2.msra.mxu0 0.0
  %1674 = vmatprep.subr.mxu0 0.0
  %1675 = vmatpush2.msra.mxu0 0.0
  %1676 = vmatprep.subr.mxu0 0.0
  %1677 = vmatpush2.msra.mxu0 0.0
  %1678 = vmatprep.subr.mxu0 0.0
  %1679 = vmatpush2.msra.mxu0 0.0
  %1680 = vmatprep.subr.mxu0 0.0
  %1681 = vmatpush2.msra.mxu0 0.0
  %1682 = vmatprep.subr.mxu0 0.0
  %1683 = vmatpush2.msra.mxu0 0.0
  %1684 = vmatprep.subr.mxu0 0.0
  %1685 = vmatpush2.msra.mxu0 0.0
  %1686 = vmatprep.subr.mxu0 0.0
  %1687 = vmatpush2.msra.mxu0 0.0
  %1688 = vmatprep.subr.mxu0 0.0
  %1689 = vmatpush2.msra.mxu0 0.0
  %1690 = vmatprep.subr.mxu0 0.0
  %1691 = vmatpush2.msra.mxu0 0.0
  %1692 = vmatprep.mubr.f32.mxu0 0.0
  %1693 = vmatmul.mubr.f32.gmra.mxu0 %v1626
  %v1694 = vpop.f32.mrf.mxu0
  %v1695 = vadd.f32 0.0, %v1694
  %v1696 = vpop.f32.mrf.mxu0
  %1697 = vdwg.mxu0
  %1699 = vrot.lane.b32.xlu0 %v1622, 32
  %v1700 = vpop.permute.xlu0 %1699
  %v1701 = vsel %vm179, %v1700, 0
  %1703 = vmatprep.subr.mxu0 0.0
  %1704 = vmatpush1.msra.mxu0 0.0
  %1705 = vmatprep.subr.mxu0 0.0
  %1706 = vmatpush1.msra.mxu0 0.0
  %1707 = vmatprep.subr.mxu0 0.0
  %1708 = vmatpush1.msra.mxu0 0.0
  %1709 = vmatprep.subr.mxu0 0.0
  %1710 = vmatpush1.msra.mxu0 0.0
  %1711 = vmatprep.subr.mxu0 0.0
  %1712 = vmatpush1.msra.mxu0 0.0
  %1713 = vmatprep.subr.mxu0 0.0
  %1714 = vmatpush1.msra.mxu0 0.0
  %1715 = vmatprep.subr.mxu0 0.0
  %1716 = vmatpush1.msra.mxu0 0.0
  %1717 = vmatprep.subr.mxu0 0.0
  %1718 = vmatpush1.msra.mxu0 0.0
  %1719 = vmatprep.subr.mxu0 0.0
  %1720 = vmatpush1.msra.mxu0 0.0
  %1721 = vmatprep.subr.mxu0 0.0
  %1722 = vmatpush1.msra.mxu0 0.0
  %1723 = vmatprep.subr.mxu0 0.0
  %1724 = vmatpush1.msra.mxu0 0.0
  %1725 = vmatprep.subr.mxu0 0.0
  %1726 = vmatpush1.msra.mxu0 0.0
  %1727 = vmatprep.subr.mxu0 0.0
  %1728 = vmatpush1.msra.mxu0 %v19
  %1729 = vmatprep.subr.mxu0 0.0
  %1730 = vmatpush1.msra.mxu0 %v18
  %1731 = vmatprep.subr.mxu0 0.0
  %1732 = vmatpush1.msra.mxu0 %v17
  %1733 = vmatprep.subr.mxu0 0.0
  %1734 = vmatpush1.msra.mxu0 %v16
  %1735 = vmatprep.subr.mxu0 0.0
  %1736 = vmatpush2.msra.mxu0 0.0
  %1737 = vmatprep.subr.mxu0 0.0
  %1738 = vmatpush2.msra.mxu0 0.0
  %1739 = vmatprep.subr.mxu0 0.0
  %1740 = vmatpush2.msra.mxu0 0.0
  %1741 = vmatprep.subr.mxu0 0.0
  %1742 = vmatpush2.msra.mxu0 0.0
  %1743 = vmatprep.subr.mxu0 0.0
  %1744 = vmatpush2.msra.mxu0 0.0
  %1745 = vmatprep.subr.mxu0 0.0
  %1746 = vmatpush2.msra.mxu0 0.0
  %1747 = vmatprep.subr.mxu0 0.0
  %1748 = vmatpush2.msra.mxu0 0.0
  %1749 = vmatprep.subr.mxu0 0.0
  %1750 = vmatpush2.msra.mxu0 0.0
  %1751 = vmatprep.subr.mxu0 0.0
  %1752 = vmatpush2.msra.mxu0 0.0
  %1753 = vmatprep.subr.mxu0 0.0
  %1754 = vmatpush2.msra.mxu0 0.0
  %1755 = vmatprep.subr.mxu0 0.0
  %1756 = vmatpush2.msra.mxu0 0.0
  %1757 = vmatprep.subr.mxu0 0.0
  %1758 = vmatpush2.msra.mxu0 0.0
  %1759 = vmatprep.subr.mxu0 0.0
  %1760 = vmatpush2.msra.mxu0 0.0
  %1761 = vmatprep.subr.mxu0 0.0
  %1762 = vmatpush2.msra.mxu0 0.0
  %1763 = vmatprep.subr.mxu0 0.0
  %1764 = vmatpush2.msra.mxu0 0.0
  %1765 = vmatprep.subr.mxu0 0.0
  %1766 = vmatpush2.msra.mxu0 0.0
  %1767 = vmatprep.mubr.f32.mxu0 0.0
  %1768 = vmatmul.mubr.f32.gmra.mxu0 %v1701
  %v1769 = vpop.f32.mrf.mxu0
  %v1770 = vadd.f32 %v1695, %v1769
  %v1771 = vpop.f32.mrf.mxu0
  %1772 = vdwg.mxu0
  %v1773 = vadd.f32 %v1770, %v32
  %v1774 = vxor.u32 %v1773, 2147483648
  %v1775 = vmul.f32 %v1774, 1.442695
  %v1776 = vpow.pop %v1775
  %v1777 = vadd.f32 %v1776, 1.0
  %v1778 = vrcp.pop %v1777
  %v1779 = vmul.f32 1.0, %v1778
  %v1780 = vtanh.pop %v1773
  %v1781 = vmul.f32 %v1779, %v1521
  %1783 = vrot.lane.b32.xlu0 %v1780, 64
  %v1784 = vpop.permute.xlu0 %1783
  %v1786 = vmul.f32 %v1779, %v1784
  %1788 = vrot.lane.b32.xlu0 %v1786, 32
  %v1789 = vpop.permute.xlu0 %1788
  %v1791 = vadd.f32 %v1781, %v1789
  %v1792 = vtanh.pop %v1791
  %1794 = vrot.lane.b32.xlu0 %v1792, 64
  %v1795 = vpop.permute.xlu0 %1794
  %v1797 = vmul.f32 %v1779, %v1795
  %1798 = vmatprep.subr.mxu0 0.0
  %1799 = vmatpush1.msra.mxu0 0.0
  %1800 = vmatprep.subr.mxu0 0.0
  %1801 = vmatpush1.msra.mxu0 0.0
  %1802 = vmatprep.subr.mxu0 0.0
  %1803 = vmatpush1.msra.mxu0 0.0
  %1804 = vmatprep.subr.mxu0 0.0
  %1805 = vmatpush1.msra.mxu0 0.0
  %1806 = vmatprep.subr.mxu0 0.0
  %1807 = vmatpush1.msra.mxu0 0.0
  %1808 = vmatprep.subr.mxu0 0.0
  %1809 = vmatpush1.msra.mxu0 0.0
  %1810 = vmatprep.subr.mxu0 0.0
  %1811 = vmatpush1.msra.mxu0 0.0
  %1812 = vmatprep.subr.mxu0 0.0
  %1813 = vmatpush1.msra.mxu0 0.0
  %1814 = vmatprep.subr.mxu0 0.0
  %1815 = vmatpush1.msra.mxu0 0.0
  %1816 = vmatprep.subr.mxu0 0.0
  %1817 = vmatpush1.msra.mxu0 0.0
  %1818 = vmatprep.subr.mxu0 0.0
  %1819 = vmatpush1.msra.mxu0 0.0
  %1820 = vmatprep.subr.mxu0 0.0
  %1821 = vmatpush1.msra.mxu0 0.0
  %1822 = vmatprep.subr.mxu0 0.0
  %1823 = vmatpush1.msra.mxu0 %v15
  %1824 = vmatprep.subr.mxu0 0.0
  %1825 = vmatpush1.msra.mxu0 %v14
  %1826 = vmatprep.subr.mxu0 0.0
  %1827 = vmatpush1.msra.mxu0 %v13
  %1828 = vmatprep.subr.mxu0 0.0
  %1829 = vmatpush1.msra.mxu0 %v12
  %1830 = vmatprep.subr.mxu0 0.0
  %1831 = vmatpush2.msra.mxu0 0.0
  %1832 = vmatprep.subr.mxu0 0.0
  %1833 = vmatpush2.msra.mxu0 0.0
  %1834 = vmatprep.subr.mxu0 0.0
  %1835 = vmatpush2.msra.mxu0 0.0
  %1836 = vmatprep.subr.mxu0 0.0
  %1837 = vmatpush2.msra.mxu0 0.0
  %1838 = vmatprep.subr.mxu0 0.0
  %1839 = vmatpush2.msra.mxu0 0.0
  %1840 = vmatprep.subr.mxu0 0.0
  %1841 = vmatpush2.msra.mxu0 0.0
  %1842 = vmatprep.subr.mxu0 0.0
  %1843 = vmatpush2.msra.mxu0 0.0
  %1844 = vmatprep.subr.mxu0 0.0
  %1845 = vmatpush2.msra.mxu0 0.0
  %1846 = vmatprep.subr.mxu0 0.0
  %1847 = vmatpush2.msra.mxu0 0.0
  %1848 = vmatprep.subr.mxu0 0.0
  %1849 = vmatpush2.msra.mxu0 0.0
  %1850 = vmatprep.subr.mxu0 0.0
  %1851 = vmatpush2.msra.mxu0 0.0
  %1852 = vmatprep.subr.mxu0 0.0
  %1853 = vmatpush2.msra.mxu0 0.0
  %1854 = vmatprep.subr.mxu0 0.0
  %1855 = vmatpush2.msra.mxu0 0.0
  %1856 = vmatprep.subr.mxu0 0.0
  %1857 = vmatpush2.msra.mxu0 0.0
  %1858 = vmatprep.subr.mxu0 0.0
  %1859 = vmatpush2.msra.mxu0 0.0
  %1860 = vmatprep.subr.mxu0 0.0
  %1861 = vmatpush2.msra.mxu0 0.0
  %1862 = vmatprep.mubr.f32.mxu0 0.0
  %1863 = vmatmul.mubr.f32.gmra.mxu0 %v1701
  %v1864 = vpop.f32.mrf.mxu0
  %v1865 = vadd.f32 0.0, %v1864
  %v1866 = vpop.f32.mrf.mxu0
  %1867 = vdwg.mxu0
  %v1868 = vadd.f32 %v171, %v1865
  %v1869 = vxor.u32 %v1868, 2147483648
  %v1870 = vmul.f32 %v1869, 1.442695
  %v1871 = vpow.pop %v1870
  %v1872 = vadd.f32 %v1871, 1.0
  %v1873 = vrcp.pop %v1872
  %v1874 = vmul.f32 1.0, %v1873
  %v1875 = vtanh.pop %v1868
  %v1876 = vmul.f32 %v1874, %v1616
  %1878 = vrot.lane.b32.xlu0 %v1875, 64
  %v1879 = vpop.permute.xlu0 %1878
  %v1881 = vmul.f32 %v1874, %v1879
  %1883 = vrot.lane.b32.xlu0 %v1881, 32
  %v1884 = vpop.permute.xlu0 %1883
  %v1886 = vadd.f32 %v1876, %v1884
  %v1887 = vtanh.pop %v1886
  %1889 = vrot.lane.b32.xlu0 %v1887, 64
  %v1890 = vpop.permute.xlu0 %1889
  %v1892 = vmul.f32 %v1874, %v1890
  %1894 = vrot.lane.b32.xlu0 %v1797, 32
  %v1895 = vpop.permute.xlu0 %1894
  %v1896 = vsel %vm179, %v1895, 0
  %1898 = vmatprep.subr.mxu0 0.0
  %1899 = vmatpush1.msra.mxu0 0.0
  %1900 = vmatprep.subr.mxu0 0.0
  %1901 = vmatpush1.msra.mxu0 0.0
  %1902 = vmatprep.subr.mxu0 0.0
  %1903 = vmatpush1.msra.mxu0 0.0
  %1904 = vmatprep.subr.mxu0 0.0
  %1905 = vmatpush1.msra.mxu0 0.0
  %1906 = vmatprep.subr.mxu0 0.0
  %1907 = vmatpush1.msra.mxu0 0.0
  %1908 = vmatprep.subr.mxu0 0.0
  %1909 = vmatpush1.msra.mxu0 0.0
  %1910 = vmatprep.subr.mxu0 0.0
  %1911 = vmatpush1.msra.mxu0 0.0
  %1912 = vmatprep.subr.mxu0 0.0
  %1913 = vmatpush1.msra.mxu0 0.0
  %1914 = vmatprep.subr.mxu0 0.0
  %1915 = vmatpush1.msra.mxu0 0.0
  %1916 = vmatprep.subr.mxu0 0.0
  %1917 = vmatpush1.msra.mxu0 0.0
  %1918 = vmatprep.subr.mxu0 0.0
  %1919 = vmatpush1.msra.mxu0 0.0
  %1920 = vmatprep.subr.mxu0 0.0
  %1921 = vmatpush1.msra.mxu0 0.0
  %1922 = vmatprep.subr.mxu0 0.0
  %1923 = vmatpush1.msra.mxu0 %v23
  %1924 = vmatprep.subr.mxu0 0.0
  %1925 = vmatpush1.msra.mxu0 %v22
  %1926 = vmatprep.subr.mxu0 0.0
  %1927 = vmatpush1.msra.mxu0 %v21
  %1928 = vmatprep.subr.mxu0 0.0
  %1929 = vmatpush1.msra.mxu0 %v20
  %1930 = vmatprep.subr.mxu0 0.0
  %1931 = vmatpush2.msra.mxu0 0.0
  %1932 = vmatprep.subr.mxu0 0.0
  %1933 = vmatpush2.msra.mxu0 0.0
  %1934 = vmatprep.subr.mxu0 0.0
  %1935 = vmatpush2.msra.mxu0 0.0
  %1936 = vmatprep.subr.mxu0 0.0
  %1937 = vmatpush2.msra.mxu0 0.0
  %1938 = vmatprep.subr.mxu0 0.0
  %1939 = vmatpush2.msra.mxu0 0.0
  %1940 = vmatprep.subr.mxu0 0.0
  %1941 = vmatpush2.msra.mxu0 0.0
  %1942 = vmatprep.subr.mxu0 0.0
  %1943 = vmatpush2.msra.mxu0 0.0
  %1944 = vmatprep.subr.mxu0 0.0
  %1945 = vmatpush2.msra.mxu0 0.0
  %1946 = vmatprep.subr.mxu0 0.0
  %1947 = vmatpush2.msra.mxu0 0.0
  %1948 = vmatprep.subr.mxu0 0.0
  %1949 = vmatpush2.msra.mxu0 0.0
  %1950 = vmatprep.subr.mxu0 0.0
  %1951 = vmatpush2.msra.mxu0 0.0
  %1952 = vmatprep.subr.mxu0 0.0
  %1953 = vmatpush2.msra.mxu0 0.0
  %1954 = vmatprep.subr.mxu0 0.0
  %1955 = vmatpush2.msra.mxu0 0.0
  %1956 = vmatprep.subr.mxu0 0.0
  %1957 = vmatpush2.msra.mxu0 0.0
  %1958 = vmatprep.subr.mxu0 0.0
  %1959 = vmatpush2.msra.mxu0 0.0
  %1960 = vmatprep.subr.mxu0 0.0
  %1961 = vmatpush2.msra.mxu0 0.0
  %1962 = vmatprep.mubr.f32.mxu0 0.0
  %1963 = vmatmul.mubr.f32.gmra.mxu0 %v1896
  %v1964 = vpop.f32.mrf.mxu0
  %v1965 = vadd.f32 0.0, %v1964
  %v1966 = vpop.f32.mrf.mxu0
  %1967 = vdwg.mxu0
  %1969 = vrot.lane.b32.xlu0 %v1892, 32
  %v1970 = vpop.permute.xlu0 %1969
  %v1971 = vsel %vm179, %v1970, 0
  %1973 = vmatprep.subr.mxu0 0.0
  %1974 = vmatpush1.msra.mxu0 0.0
  %1975 = vmatprep.subr.mxu0 0.0
  %1976 = vmatpush1.msra.mxu0 0.0
  %1977 = vmatprep.subr.mxu0 0.0
  %1978 = vmatpush1.msra.mxu0 0.0
  %1979 = vmatprep.subr.mxu0 0.0
  %1980 = vmatpush1.msra.mxu0 0.0
  %1981 = vmatprep.subr.mxu0 0.0
  %1982 = vmatpush1.msra.mxu0 0.0
  %1983 = vmatprep.subr.mxu0 0.0
  %1984 = vmatpush1.msra.mxu0 0.0
  %1985 = vmatprep.subr.mxu0 0.0
  %1986 = vmatpush1.msra.mxu0 0.0
  %1987 = vmatprep.subr.mxu0 0.0
  %1988 = vmatpush1.msra.mxu0 0.0
  %1989 = vmatprep.subr.mxu0 0.0
  %1990 = vmatpush1.msra.mxu0 0.0
  %1991 = vmatprep.subr.mxu0 0.0
  %1992 = vmatpush1.msra.mxu0 0.0
  %1993 = vmatprep.subr.mxu0 0.0
  %1994 = vmatpush1.msra.mxu0 0.0
  %1995 = vmatprep.subr.mxu0 0.0
  %1996 = vmatpush1.msra.mxu0 0.0
  %1997 = vmatprep.subr.mxu0 0.0
  %1998 = vmatpush1.msra.mxu0 %v19
  %1999 = vmatprep.subr.mxu0 0.0
  %2000 = vmatpush1.msra.mxu0 %v18
  %2001 = vmatprep.subr.mxu0 0.0
  %2002 = vmatpush1.msra.mxu0 %v17
  %2003 = vmatprep.subr.mxu0 0.0
  %2004 = vmatpush1.msra.mxu0 %v16
  %2005 = vmatprep.subr.mxu0 0.0
  %2006 = vmatpush2.msra.mxu0 0.0
  %2007 = vmatprep.subr.mxu0 0.0
  %2008 = vmatpush2.msra.mxu0 0.0
  %2009 = vmatprep.subr.mxu0 0.0
  %2010 = vmatpush2.msra.mxu0 0.0
  %2011 = vmatprep.subr.mxu0 0.0
  %2012 = vmatpush2.msra.mxu0 0.0
  %2013 = vmatprep.subr.mxu0 0.0
  %2014 = vmatpush2.msra.mxu0 0.0
  %2015 = vmatprep.subr.mxu0 0.0
  %2016 = vmatpush2.msra.mxu0 0.0
  %2017 = vmatprep.subr.mxu0 0.0
  %2018 = vmatpush2.msra.mxu0 0.0
  %2019 = vmatprep.subr.mxu0 0.0
  %2020 = vmatpush2.msra.mxu0 0.0
  %2021 = vmatprep.subr.mxu0 0.0
  %2022 = vmatpush2.msra.mxu0 0.0
  %2023 = vmatprep.subr.mxu0 0.0
  %2024 = vmatpush2.msra.mxu0 0.0
  %2025 = vmatprep.subr.mxu0 0.0
  %2026 = vmatpush2.msra.mxu0 0.0
  %2027 = vmatprep.subr.mxu0 0.0
  %2028 = vmatpush2.msra.mxu0 0.0
  %2029 = vmatprep.subr.mxu0 0.0
  %2030 = vmatpush2.msra.mxu0 0.0
  %2031 = vmatprep.subr.mxu0 0.0
  %2032 = vmatpush2.msra.mxu0 0.0
  %2033 = vmatprep.subr.mxu0 0.0
  %2034 = vmatpush2.msra.mxu0 0.0
  %2035 = vmatprep.subr.mxu0 0.0
  %2036 = vmatpush2.msra.mxu0 0.0
  %2037 = vmatprep.mubr.f32.mxu0 0.0
  %2038 = vmatmul.mubr.f32.gmra.mxu0 %v1971
  %v2039 = vpop.f32.mrf.mxu0
  %v2040 = vadd.f32 %v1965, %v2039
  %v2041 = vpop.f32.mrf.mxu0
  %2042 = vdwg.mxu0
  %v2043 = vadd.f32 %v2040, %v32
  %v2044 = vxor.u32 %v2043, 2147483648
  %v2045 = vmul.f32 %v2044, 1.442695
  %v2046 = vpow.pop %v2045
  %v2047 = vadd.f32 %v2046, 1.0
  %v2048 = vrcp.pop %v2047
  %v2049 = vmul.f32 1.0, %v2048
  %v2050 = vtanh.pop %v2043
  %v2051 = vmul.f32 %v2049, %v1791
  %2053 = vrot.lane.b32.xlu0 %v2050, 64
  %v2054 = vpop.permute.xlu0 %2053
  %v2056 = vmul.f32 %v2049, %v2054
  %2058 = vrot.lane.b32.xlu0 %v2056, 32
  %v2059 = vpop.permute.xlu0 %2058
  %v2061 = vadd.f32 %v2051, %v2059
  %v2062 = vtanh.pop %v2061
  %2064 = vrot.lane.b32.xlu0 %v2062, 64
  %v2065 = vpop.permute.xlu0 %2064
  %v2067 = vmul.f32 %v2049, %v2065
  %2068 = vmatprep.subr.mxu0 0.0
  %2069 = vmatpush1.msra.mxu0 0.0
  %2070 = vmatprep.subr.mxu0 0.0
  %2071 = vmatpush1.msra.mxu0 0.0
  %2072 = vmatprep.subr.mxu0 0.0
  %2073 = vmatpush1.msra.mxu0 0.0
  %2074 = vmatprep.subr.mxu0 0.0
  %2075 = vmatpush1.msra.mxu0 0.0
  %2076 = vmatprep.subr.mxu0 0.0
  %2077 = vmatpush1.msra.mxu0 0.0
  %2078 = vmatprep.subr.mxu0 0.0
  %2079 = vmatpush1.msra.mxu0 0.0
  %2080 = vmatprep.subr.mxu0 0.0
  %2081 = vmatpush1.msra.mxu0 0.0
  %2082 = vmatprep.subr.mxu0 0.0
  %2083 = vmatpush1.msra.mxu0 0.0
  %2084 = vmatprep.subr.mxu0 0.0
  %2085 = vmatpush1.msra.mxu0 0.0
  %2086 = vmatprep.subr.mxu0 0.0
  %2087 = vmatpush1.msra.mxu0 0.0
  %2088 = vmatprep.subr.mxu0 0.0
  %2089 = vmatpush1.msra.mxu0 0.0
  %2090 = vmatprep.subr.mxu0 0.0
  %2091 = vmatpush1.msra.mxu0 0.0
  %2092 = vmatprep.subr.mxu0 0.0
  %2093 = vmatpush1.msra.mxu0 %v15
  %2094 = vmatprep.subr.mxu0 0.0
  %2095 = vmatpush1.msra.mxu0 %v14
  %2096 = vmatprep.subr.mxu0 0.0
  %2097 = vmatpush1.msra.mxu0 %v13
  %2098 = vmatprep.subr.mxu0 0.0
  %2099 = vmatpush1.msra.mxu0 %v12
  %2100 = vmatprep.subr.mxu0 0.0
  %2101 = vmatpush2.msra.mxu0 0.0
  %2102 = vmatprep.subr.mxu0 0.0
  %2103 = vmatpush2.msra.mxu0 0.0
  %2104 = vmatprep.subr.mxu0 0.0
  %2105 = vmatpush2.msra.mxu0 0.0
  %2106 = vmatprep.subr.mxu0 0.0
  %2107 = vmatpush2.msra.mxu0 0.0
  %2108 = vmatprep.subr.mxu0 0.0
  %2109 = vmatpush2.msra.mxu0 0.0
  %2110 = vmatprep.subr.mxu0 0.0
  %2111 = vmatpush2.msra.mxu0 0.0
  %2112 = vmatprep.subr.mxu0 0.0
  %2113 = vmatpush2.msra.mxu0 0.0
  %2114 = vmatprep.subr.mxu0 0.0
  %2115 = vmatpush2.msra.mxu0 0.0
  %2116 = vmatprep.subr.mxu0 0.0
  %2117 = vmatpush2.msra.mxu0 0.0
  %2118 = vmatprep.subr.mxu0 0.0
  %2119 = vmatpush2.msra.mxu0 0.0
  %2120 = vmatprep.subr.mxu0 0.0
  %2121 = vmatpush2.msra.mxu0 0.0
  %2122 = vmatprep.subr.mxu0 0.0
  %2123 = vmatpush2.msra.mxu0 0.0
  %2124 = vmatprep.subr.mxu0 0.0
  %2125 = vmatpush2.msra.mxu0 0.0
  %2126 = vmatprep.subr.mxu0 0.0
  %2127 = vmatpush2.msra.mxu0 0.0
  %2128 = vmatprep.subr.mxu0 0.0
  %2129 = vmatpush2.msra.mxu0 0.0
  %2130 = vmatprep.subr.mxu0 0.0
  %2131 = vmatpush2.msra.mxu0 0.0
  %2132 = vmatprep.mubr.f32.mxu0 0.0
  %2133 = vmatmul.mubr.f32.gmra.mxu0 %v1971
  %v2134 = vpop.f32.mrf.mxu0
  %v2135 = vadd.f32 0.0, %v2134
  %v2136 = vpop.f32.mrf.mxu0
  %2137 = vdwg.mxu0
  %v2138 = vadd.f32 %v176, %v2135
  %v2139 = vxor.u32 %v2138, 2147483648
  %v2140 = vmul.f32 %v2139, 1.442695
  %v2141 = vpow.pop %v2140
  %v2142 = vadd.f32 %v2141, 1.0
  %v2143 = vrcp.pop %v2142
  %v2144 = vmul.f32 1.0, %v2143
  %v2145 = vtanh.pop %v2138
  %v2146 = vmul.f32 %v2144, %v1886
  %2148 = vrot.lane.b32.xlu0 %v2145, 64
  %v2149 = vpop.permute.xlu0 %2148
  %v2151 = vmul.f32 %v2144, %v2149
  %2153 = vrot.lane.b32.xlu0 %v2151, 32
  %v2154 = vpop.permute.xlu0 %2153
  %v2156 = vadd.f32 %v2146, %v2154
  %v2157 = vtanh.pop %v2156
  %2159 = vrot.lane.b32.xlu0 %v2157, 64
  %v2160 = vpop.permute.xlu0 %2159
  %v2162 = vmul.f32 %v2144, %v2160
  %2164 = vrot.lane.b32.xlu0 %v2067, 32
  %v2165 = vpop.permute.xlu0 %2164
  %v2166 = vsel %vm179, %v2165, 0
  %2168 = vmatprep.subr.mxu0 0.0
  %2169 = vmatpush1.msra.mxu0 0.0
  %2170 = vmatprep.subr.mxu0 0.0
  %2171 = vmatpush1.msra.mxu0 0.0
  %2172 = vmatprep.subr.mxu0 0.0
  %2173 = vmatpush1.msra.mxu0 0.0
  %2174 = vmatprep.subr.mxu0 0.0
  %2175 = vmatpush1.msra.mxu0 0.0
  %2176 = vmatprep.subr.mxu0 0.0
  %2177 = vmatpush1.msra.mxu0 0.0
  %2178 = vmatprep.subr.mxu0 0.0
  %2179 = vmatpush1.msra.mxu0 0.0
  %2180 = vmatprep.subr.mxu0 0.0
  %2181 = vmatpush1.msra.mxu0 0.0
  %2182 = vmatprep.subr.mxu0 0.0
  %2183 = vmatpush1.msra.mxu0 0.0
  %2184 = vmatprep.subr.mxu0 0.0
  %2185 = vmatpush1.msra.mxu0 0.0
  %2186 = vmatprep.subr.mxu0 0.0
  %2187 = vmatpush1.msra.mxu0 0.0
  %2188 = vmatprep.subr.mxu0 0.0
  %2189 = vmatpush1.msra.mxu0 0.0
  %2190 = vmatprep.subr.mxu0 0.0
  %2191 = vmatpush1.msra.mxu0 0.0
  %2192 = vmatprep.subr.mxu0 0.0
  %2193 = vmatpush1.msra.mxu0 %v23
  %2194 = vmatprep.subr.mxu0 0.0
  %2195 = vmatpush1.msra.mxu0 %v22
  %2196 = vmatprep.subr.mxu0 0.0
  %2197 = vmatpush1.msra.mxu0 %v21
  %2198 = vmatprep.subr.mxu0 0.0
  %2199 = vmatpush1.msra.mxu0 %v20
  %2200 = vmatprep.subr.mxu0 0.0
  %2201 = vmatpush2.msra.mxu0 0.0
  %2202 = vmatprep.subr.mxu0 0.0
  %2203 = vmatpush2.msra.mxu0 0.0
  %2204 = vmatprep.subr.mxu0 0.0
  %2205 = vmatpush2.msra.mxu0 0.0
  %2206 = vmatprep.subr.mxu0 0.0
  %2207 = vmatpush2.msra.mxu0 0.0
  %2208 = vmatprep.subr.mxu0 0.0
  %2209 = vmatpush2.msra.mxu0 0.0
  %2210 = vmatprep.subr.mxu0 0.0
  %2211 = vmatpush2.msra.mxu0 0.0
  %2212 = vmatprep.subr.mxu0 0.0
  %2213 = vmatpush2.msra.mxu0 0.0
  %2214 = vmatprep.subr.mxu0 0.0
  %2215 = vmatpush2.msra.mxu0 0.0
  %2216 = vmatprep.subr.mxu0 0.0
  %2217 = vmatpush2.msra.mxu0 0.0
  %2218 = vmatprep.subr.mxu0 0.0
  %2219 = vmatpush2.msra.mxu0 0.0
  %2220 = vmatprep.subr.mxu0 0.0
  %2221 = vmatpush2.msra.mxu0 0.0
  %2222 = vmatprep.subr.mxu0 0.0
  %2223 = vmatpush2.msra.mxu0 0.0
  %2224 = vmatprep.subr.mxu0 0.0
  %2225 = vmatpush2.msra.mxu0 0.0
  %2226 = vmatprep.subr.mxu0 0.0
  %2227 = vmatpush2.msra.mxu0 0.0
  %2228 = vmatprep.subr.mxu0 0.0
  %2229 = vmatpush2.msra.mxu0 0.0
  %2230 = vmatprep.subr.mxu0 0.0
  %2231 = vmatpush2.msra.mxu0 0.0
  %2232 = vmatprep.mubr.f32.mxu0 0.0
  %2233 = vmatmul.mubr.f32.gmra.mxu0 %v2166
  %v2234 = vpop.f32.mrf.mxu0
  %v2235 = vadd.f32 0.0, %v2234
  %v2236 = vpop.f32.mrf.mxu0
  %2237 = vdwg.mxu0
  %2239 = vrot.lane.b32.xlu0 %v2162, 32
  %v2240 = vpop.permute.xlu0 %2239
  %v2241 = vsel %vm179, %v2240, 0
  %2243 = vmatprep.subr.mxu0 0.0
  %2244 = vmatpush1.msra.mxu0 0.0
  %2245 = vmatprep.subr.mxu0 0.0
  %2246 = vmatpush1.msra.mxu0 0.0
  %2247 = vmatprep.subr.mxu0 0.0
  %2248 = vmatpush1.msra.mxu0 0.0
  %2249 = vmatprep.subr.mxu0 0.0
  %2250 = vmatpush1.msra.mxu0 0.0
  %2251 = vmatprep.subr.mxu0 0.0
  %2252 = vmatpush1.msra.mxu0 0.0
  %2253 = vmatprep.subr.mxu0 0.0
  %2254 = vmatpush1.msra.mxu0 0.0
  %2255 = vmatprep.subr.mxu0 0.0
  %2256 = vmatpush1.msra.mxu0 0.0
  %2257 = vmatprep.subr.mxu0 0.0
  %2258 = vmatpush1.msra.mxu0 0.0
  %2259 = vmatprep.subr.mxu0 0.0
  %2260 = vmatpush1.msra.mxu0 0.0
  %2261 = vmatprep.subr.mxu0 0.0
  %2262 = vmatpush1.msra.mxu0 0.0
  %2263 = vmatprep.subr.mxu0 0.0
  %2264 = vmatpush1.msra.mxu0 0.0
  %2265 = vmatprep.subr.mxu0 0.0
  %2266 = vmatpush1.msra.mxu0 0.0
  %2267 = vmatprep.subr.mxu0 0.0
  %2268 = vmatpush1.msra.mxu0 %v19
  %2269 = vmatprep.subr.mxu0 0.0
  %2270 = vmatpush1.msra.mxu0 %v18
  %2271 = vmatprep.subr.mxu0 0.0
  %2272 = vmatpush1.msra.mxu0 %v17
  %2273 = vmatprep.subr.mxu0 0.0
  %2274 = vmatpush1.msra.mxu0 %v16
  %2275 = vmatprep.subr.mxu0 0.0
  %2276 = vmatpush2.msra.mxu0 0.0
  %2277 = vmatprep.subr.mxu0 0.0
  %2278 = vmatpush2.msra.mxu0 0.0
  %2279 = vmatprep.subr.mxu0 0.0
  %2280 = vmatpush2.msra.mxu0 0.0
  %2281 = vmatprep.subr.mxu0 0.0
  %2282 = vmatpush2.msra.mxu0 0.0
  %2283 = vmatprep.subr.mxu0 0.0
  %2284 = vmatpush2.msra.mxu0 0.0
  %2285 = vmatprep.subr.mxu0 0.0
  %2286 = vmatpush2.msra.mxu0 0.0
  %2287 = vmatprep.subr.mxu0 0.0
  %2288 = vmatpush2.msra.mxu0 0.0
  %2289 = vmatprep.subr.mxu0 0.0
  %2290 = vmatpush2.msra.mxu0 0.0
  %2291 = vmatprep.subr.mxu0 0.0
  %2292 = vmatpush2.msra.mxu0 0.0
  %2293 = vmatprep.subr.mxu0 0.0
  %2294 = vmatpush2.msra.mxu0 0.0
  %2295 = vmatprep.subr.mxu0 0.0
  %2296 = vmatpush2.msra.mxu0 0.0
  %2297 = vmatprep.subr.mxu0 0.0
  %2298 = vmatpush2.msra.mxu0 0.0
  %2299 = vmatprep.subr.mxu0 0.0
  %2300 = vmatpush2.msra.mxu0 0.0
  %2301 = vmatprep.subr.mxu0 0.0
  %2302 = vmatpush2.msra.mxu0 0.0
  %2303 = vmatprep.subr.mxu0 0.0
  %2304 = vmatpush2.msra.mxu0 0.0
  %2305 = vmatprep.subr.mxu0 0.0
  %2306 = vmatpush2.msra.mxu0 0.0
  %2307 = vmatprep.mubr.f32.mxu0 0.0
  %2308 = vmatmul.mubr.f32.gmra.mxu0 %v2241
  %v2309 = vpop.f32.mrf.mxu0
  %v2310 = vadd.f32 %v2235, %v2309
  %v2311 = vpop.f32.mrf.mxu0
  %2312 = vdwg.mxu0
  %v2313 = vadd.f32 %v2310, %v32
  %v2314 = vxor.u32 %v2313, 2147483648
  %v2315 = vmul.f32 %v2314, 1.442695
  %v2316 = vpow.pop %v2315
  %v2317 = vadd.f32 %v2316, 1.0
  %v2318 = vrcp.pop %v2317
  %v2319 = vmul.f32 1.0, %v2318
  %v2320 = vtanh.pop %v2313
  %v2321 = vmul.f32 %v2319, %v2061
  %2323 = vrot.lane.b32.xlu0 %v2320, 64
  %v2324 = vpop.permute.xlu0 %2323
  %v2326 = vmul.f32 %v2319, %v2324
  %2328 = vrot.lane.b32.xlu0 %v2326, 32
  %v2329 = vpop.permute.xlu0 %2328
  %v2331 = vadd.f32 %v2321, %v2329
  %v2332 = vtanh.pop %v2331
  %2334 = vrot.lane.b32.xlu0 %v2332, 64
  %v2335 = vpop.permute.xlu0 %2334
  %v2337 = vmul.f32 %v2319, %v2335
  %2339 = vrot.lane.b32.xlu0 %v2337, 32
  %v2340 = vpop.permute.xlu0 %2339
  %v2341 = vsel %vm179, %v2340, 0
  %2343 = vmatprep.subr.mxu0 0.0
  %2344 = vmatpush1.msra.mxu0 0.0
  %2345 = vmatprep.subr.mxu0 0.0
  %2346 = vmatpush1.msra.mxu0 0.0
  %2347 = vmatprep.subr.mxu0 0.0
  %2348 = vmatpush1.msra.mxu0 0.0
  %2349 = vmatprep.subr.mxu0 0.0
  %2350 = vmatpush1.msra.mxu0 0.0
  %2351 = vmatprep.subr.mxu0 0.0
  %2352 = vmatpush1.msra.mxu0 0.0
  %2353 = vmatprep.subr.mxu0 0.0
  %2354 = vmatpush1.msra.mxu0 0.0
  %2355 = vmatprep.subr.mxu0 0.0
  %2356 = vmatpush1.msra.mxu0 0.0
  %2357 = vmatprep.subr.mxu0 0.0
  %2358 = vmatpush1.msra.mxu0 0.0
  %2359 = vmatprep.subr.mxu0 0.0
  %2360 = vmatpush1.msra.mxu0 0.0
  %2361 = vmatprep.subr.mxu0 0.0
  %2362 = vmatpush1.msra.mxu0 0.0
  %2363 = vmatprep.subr.mxu0 0.0
  %2364 = vmatpush1.msra.mxu0 0.0
  %2365 = vmatprep.subr.mxu0 0.0
  %2366 = vmatpush1.msra.mxu0 0.0
  %2367 = vmatprep.subr.mxu0 0.0
  %2368 = vmatpush1.msra.mxu0 %v36
  %2369 = vmatprep.subr.mxu0 0.0
  %2370 = vmatpush1.msra.mxu0 %v35
  %2371 = vmatprep.subr.mxu0 0.0
  %2372 = vmatpush1.msra.mxu0 %v34
  %2373 = vmatprep.subr.mxu0 0.0
  %2374 = vmatpush1.msra.mxu0 %v33
  %2375 = vmatprep.subr.mxu0 0.0
  %2376 = vmatpush2.msra.mxu0 0.0
  %2377 = vmatprep.subr.mxu0 0.0
  %2378 = vmatpush2.msra.mxu0 0.0
  %2379 = vmatprep.subr.mxu0 0.0
  %2380 = vmatpush2.msra.mxu0 0.0
  %2381 = vmatprep.subr.mxu0 0.0
  %2382 = vmatpush2.msra.mxu0 0.0
  %2383 = vmatprep.subr.mxu0 0.0
  %2384 = vmatpush2.msra.mxu0 0.0
  %2385 = vmatprep.subr.mxu0 0.0
  %2386 = vmatpush2.msra.mxu0 0.0
  %2387 = vmatprep.subr.mxu0 0.0
  %2388 = vmatpush2.msra.mxu0 0.0
  %2389 = vmatprep.subr.mxu0 0.0
  %2390 = vmatpush2.msra.mxu0 0.0
  %2391 = vmatprep.subr.mxu0 0.0
  %2392 = vmatpush2.msra.mxu0 0.0
  %2393 = vmatprep.subr.mxu0 0.0
  %2394 = vmatpush2.msra.mxu0 0.0
  %2395 = vmatprep.subr.mxu0 0.0
  %2396 = vmatpush2.msra.mxu0 0.0
  %2397 = vmatprep.subr.mxu0 0.0
  %2398 = vmatpush2.msra.mxu0 0.0
  %2399 = vmatprep.subr.mxu0 0.0
  %2400 = vmatpush2.msra.mxu0 0.0
  %2401 = vmatprep.subr.mxu0 0.0
  %2402 = vmatpush2.msra.mxu0 0.0
  %2403 = vmatprep.subr.mxu0 0.0
  %2404 = vmatpush2.msra.mxu0 0.0
  %2405 = vmatprep.subr.mxu0 0.0
  %2406 = vmatpush2.msra.mxu0 0.0
  %2407 = vmatprep.mubr.f32.mxu0 0.0
  %2408 = vmatmul.mubr.f32.gmra.mxu0 %v2341
  %v2409 = vpop.f32.mrf.mxu0
  %v2410 = vadd.f32 %v37, %v2409
  %v2411 = vpop.f32.mrf.mxu0
  %2412 = vdwg.mxu0
  %v2413 = vmax.f32 %v2410, 0.0
  %vm2414 = vcmask 130048
  %v2416 = vsel %vm2414, %v2413, 0
  %2418 = vmatprep.subr.mxu0 0.0
  %2419 = vmatpush1.msra.mxu0 0.0
  %2420 = vmatprep.subr.mxu0 0.0
  %2421 = vmatpush1.msra.mxu0 0.0
  %2422 = vmatprep.subr.mxu0 0.0
  %2423 = vmatpush1.msra.mxu0 0.0
  %2424 = vmatprep.subr.mxu0 0.0
  %2425 = vmatpush1.msra.mxu0 0.0
  %2426 = vmatprep.subr.mxu0 0.0
  %2427 = vmatpush1.msra.mxu0 0.0
  %2428 = vmatprep.subr.mxu0 0.0
  %2429 = vmatpush1.msra.mxu0 0.0
  %2430 = vmatprep.subr.mxu0 0.0
  %2431 = vmatpush1.msra.mxu0 0.0
  %2432 = vmatprep.subr.mxu0 0.0
  %2433 = vmatpush1.msra.mxu0 0.0
  %2434 = vmatprep.subr.mxu0 0.0
  %2435 = vmatpush1.msra.mxu0 0.0
  %2436 = vmatprep.subr.mxu0 0.0
  %2437 = vmatpush1.msra.mxu0 0.0
  %2438 = vmatprep.subr.mxu0 0.0
  %2439 = vmatpush1.msra.mxu0 0.0
  %2440 = vmatprep.subr.mxu0 0.0
  %2441 = vmatpush1.msra.mxu0 0.0
  %2442 = vmatprep.subr.mxu0 0.0
  %2443 = vmatpush1.msra.mxu0 0.0
  %2444 = vmatprep.subr.mxu0 0.0
  %2445 = vmatpush1.msra.mxu0 0.0
  %2446 = vmatprep.subr.mxu0 0.0
  %2447 = vmatpush1.msra.mxu0 %v39
  %2448 = vmatprep.subr.mxu0 0.0
  %2449 = vmatpush1.msra.mxu0 %v38
  %2450 = vmatprep.subr.mxu0 0.0
  %2451 = vmatpush2.msra.mxu0 0.0
  %2452 = vmatprep.subr.mxu0 0.0
  %2453 = vmatpush2.msra.mxu0 0.0
  %2454 = vmatprep.subr.mxu0 0.0
  %2455 = vmatpush2.msra.mxu0 0.0
  %2456 = vmatprep.subr.mxu0 0.0
  %2457 = vmatpush2.msra.mxu0 0.0
  %2458 = vmatprep.subr.mxu0 0.0
  %2459 = vmatpush2.msra.mxu0 0.0
  %2460 = vmatprep.subr.mxu0 0.0
  %2461 = vmatpush2.msra.mxu0 0.0
  %2462 = vmatprep.subr.mxu0 0.0
  %2463 = vmatpush2.msra.mxu0 0.0
  %2464 = vmatprep.subr.mxu0 0.0
  %2465 = vmatpush2.msra.mxu0 0.0
  %2466 = vmatprep.subr.mxu0 0.0
  %2467 = vmatpush2.msra.mxu0 0.0
  %2468 = vmatprep.subr.mxu0 0.0
  %2469 = vmatpush2.msra.mxu0 0.0
  %2470 = vmatprep.subr.mxu0 0.0
  %2471 = vmatpush2.msra.mxu0 0.0
  %2472 = vmatprep.subr.mxu0 0.0
  %2473 = vmatpush2.msra.mxu0 0.0
  %2474 = vmatprep.subr.mxu0 0.0
  %2475 = vmatpush2.msra.mxu0 0.0
  %2476 = vmatprep.subr.mxu0 0.0
  %2477 = vmatpush2.msra.mxu0 0.0
  %2478 = vmatprep.subr.mxu0 0.0
  %2479 = vmatpush2.msra.mxu0 0.0
  %2480 = vmatprep.subr.mxu0 0.0
  %2481 = vmatpush2.msra.mxu0 0.0
  %2482 = vmatprep.mubr.f32.mxu0 0.0
  %2483 = vmatmul.mubr.f32.gmra.mxu0 %v2416
  %v2484 = vpop.f32.mrf.mxu0
  %v2485 = vadd.f32 %v40, %v2484
  %v2486 = vpop.f32.mrf.mxu0
  %2487 = vdwg.mxu0
  %2488 = vst [vmem:[%s2] sm:$0xff] %v2485
  // Predicated region
  $region10: #{lstm_bike_predictor.1} parent=0 // pred_check
    _
  $region11: #{lstm_bike_predictor.1} parent=0 // pred_check_branch
    %2490 = sbr.rel (0) target = $region13
  $region12: #{lstm_bike_predictor.1} parent=0 // pred_region
    _
  $region13: #{lstm_bike_predictor.1} parent=0 // pred_fallthru
    _
  // Predicated region
  $region14: #{lstm_bike_predictor.1} parent=0 // pred_check
    _
  $region15: #{lstm_bike_predictor.1} parent=0 // pred_check_branch
    %2492 = sbr.rel (0) target = $region17
  $region16: #{lstm_bike_predictor.1} parent=0 // pred_region
    _
  $region17: #{lstm_bike_predictor.1} parent=0 // pred_fallthru
    _

</llo_original>
